<compile_context>
chip_gen: v7x
topology: tpu7x:2x2x1
jax: 0.10.0
libtpu: 0.0.40
codegen_flags: <defaults>
</compile_context>

<pallas_src>
import functools

import jax
import jax.numpy as jnp
from jax import lax
from jax.experimental import pallas as pl
from jax.experimental.pallas import tpu as pltpu

# ----- module hyper-parameters (mirrors the PyTorch defaults) -----------------
LEAKY_RELU_NEGATIVE_SLOPE = 0.2
DEFAULT_TRANSLATION_SCALE = 1.0
DEFAULT_MIN_SCALE = 0.005
DEFAULT_MAX_SCALE = 1.0
DEFAULT_MIN_BLENDING = 0.001
DEFAULT_MAX_BLENDING = 1.0

# ----- problem sizes -----------------------------------------------------------
B = 256          # batched regressor invocations fused into one pallas_call
TILE_B = 128     # batch tile per grid step (multiple of 8 sublanes)
F = 32           # input_feature_size
H = 32           # hidden width (layer_sizes=[32])
NUM_SHAPES = 4
NUM_OPS = 3

HEAD_DIMS = (NUM_SHAPES, NUM_OPS, 3, 4, 3, 1, 1)   # shape, op, trans, rot, scale, blend, round
NHEADS = len(HEAD_DIMS)
OUT_TOTAL = sum(HEAD_DIMS)                         # 19
OUT_PAD = 128                                      # lane-padded fused output width

# per-head lane offsets inside the fused, lane-padded output
_offs, _o = [], 0
for _d in HEAD_DIMS:
    _offs.append(_o)
    _o += _d
OFF_SHAPE, OFF_OP, OFF_TRANS, OFF_ROT, OFF_SCALE, OFF_BLEND, OFF_ROUND = _offs


def _primitive_regressor_kernel(x_ref, g_ref, w1_ref, b1_ref, w2_ref, b2_ref, out_ref):
    # ---- hidden layer (all 7 heads fused): Linear -> LeakyReLU(0.2) ----------
    xb = x_ref[...].astype(jnp.bfloat16)
    h = jnp.dot(xb, w1_ref[...], preferred_element_type=jnp.float32) + b1_ref[...]
    h = jnp.where(h > 0, h, LEAKY_RELU_NEGATIVE_SLOPE * h)          # [TILE_B, 7H] f32
    # TODO(synk): BatchNorm1d branch not implemented (module built with no_batch_norm=True).

    # ---- output layer: block-diagonal Linear, lane-padded to 128 columns -----
    z = jnp.dot(h.astype(jnp.bfloat16), w2_ref[...],
                preferred_element_type=jnp.float32) + b2_ref[...]   # [TILE_B, 128] f32

    lane = lax.broadcasted_iota(jnp.int32, (TILE_B, OUT_PAD), 1)

    shape_mask = lane < OFF_OP
    op_mask = jnp.logical_and(lane >= OFF_OP, lane < OFF_TRANS)
    trans_mask = jnp.logical_and(lane >= OFF_TRANS, lane < OFF_ROT)
    rot_mask = jnp.logical_and(lane >= OFF_ROT, lane < OFF_SCALE)
    scale_mask = jnp.logical_and(lane >= OFF_SCALE, lane < OFF_BLEND)
    blend_mask = lane == OFF_BLEND
    round_mask = lane == OFF_ROUND

    # ---- gumbel_softmax(hard=True, tau=0.5) forward: one-hot of argmax(z + g) ---
    zg = z + g_ref[...]
    neg_inf = jnp.float32(-jnp.inf)

    def hard_onehot(mask):
        masked = jnp.where(mask, zg, neg_inf)
        m = jnp.max(masked, axis=-1, keepdims=True)
        is_max = jnp.logical_and(mask, masked >= m)
        # first-argmax tie-break (matches PyTorch scatter at argmax on ties)
        first = jnp.min(jnp.where(is_max, lane, OUT_PAD), axis=-1, keepdims=True)
        return (lane == first).astype(jnp.float32)

    shape_oh = hard_onehot(shape_mask)
    op_oh = hard_onehot(op_mask)

    # rotation head: no activation, then F.normalize(dim=-1) = x / max(||x||, 1e-12)
    rot_sq = jnp.where(rot_mask, z * z, 0.0)
    rot_nrm = jnp.sqrt(jnp.sum(rot_sq, axis=-1, keepdims=True))
    rot_out = z / jnp.maximum(rot_nrm, 1e-12)

    sig = jax.nn.sigmoid(z)     # EUP slot; only scale/blend/round lanes are kept
    tanh_z = jnp.tanh(z)        # EUP slot; only translation lanes are kept

    out = jnp.where(shape_mask, shape_oh,
          jnp.where(op_mask, op_oh,
          jnp.where(trans_mask, tanh_z * DEFAULT_TRANSLATION_SCALE,
          jnp.where(rot_mask, rot_out,
          jnp.where(scale_mask,
                    sig * (DEFAULT_MAX_SCALE - DEFAULT_MIN_SCALE) + DEFAULT_MIN_SCALE,
          jnp.where(blend_mask,
                    sig * (DEFAULT_MAX_BLENDING - DEFAULT_MIN_BLENDING) + DEFAULT_MIN_BLENDING,
          jnp.where(round_mask, sig, 0.0)))))))

    out_ref[...] = out          # single lane-dense, unmasked store


@functools.partial(jax.jit, static_argnames=("first_prim",))
def primitive_regressor(x, gumbel_noise, w1, b1, w2, b2, first_prim=False):
    """x: [B, F]; returns (shape, operation, translation, rotation, scale, blending, roundness)."""
    grid_spec = pltpu.PrefetchScalarGridSpec(
        num_scalar_prefetch=0,
        grid=(B // TILE_B,),
        in_specs=[
            pl.BlockSpec((TILE_B, F), lambda i: (i, 0)),            # x tile
            pl.BlockSpec((TILE_B, OUT_PAD), lambda i: (i, 0)),      # gumbel noise tile
            pl.BlockSpec((F, NHEADS * H), lambda i: (0, 0)),        # w1 (VMEM-resident)
            pl.BlockSpec((1, NHEADS * H), lambda i: (0, 0)),        # b1
            pl.BlockSpec((NHEADS * H, OUT_PAD), lambda i: (0, 0)),  # w2
            pl.BlockSpec((1, OUT_PAD), lambda i: (0, 0)),           # b2
        ],
        out_specs=pl.BlockSpec((TILE_B, OUT_PAD), lambda i: (i, 0)),
    )
    fused = pl.pallas_call(
        _primitive_regressor_kernel,
        out_shape=jax.ShapeDtypeStruct((B, OUT_PAD), jnp.float32),
        grid_spec=grid_spec,
        compiler_params=pltpu.CompilerParams(dimension_semantics=("parallel",)),
    )(x, gumbel_noise, w1, b1, w2, b2)

    shape = fused[:, OFF_SHAPE:OFF_SHAPE + NUM_SHAPES]
    operation = fused[:, OFF_OP:OFF_OP + NUM_OPS]
    translation = fused[:, OFF_TRANS:OFF_TRANS + 3]
    rotation = fused[:, OFF_ROT:OFF_ROT + 4]
    scale = fused[:, OFF_SCALE:OFF_SCALE + 3]
    blending = fused[:, OFF_BLEND:OFF_BLEND + 1]
    roundness = fused[:, OFF_ROUND:OFF_ROUND + 1]

    # scale_operations() is the identity: set_operation_weight was never called.
    if first_prim:
        blending = None
    return shape, operation, translation, rotation, scale, blending, roundness


def init_params(key):
    """Deterministic per-head Linear params, packed for the fused kernel."""
    w1_blocks, b1_blocks, w2_blocks, b2_blocks = [], [], [], []
    for hd in HEAD_DIMS:
        key, k1, k2, k3, k4 = jax.random.split(key, 5)
        lim1 = 1.0 / jnp.sqrt(F)
        lim2 = 1.0 / jnp.sqrt(H)
        w1_blocks.append(jax.random.uniform(k1, (F, H), jnp.float32, -lim1, lim1))
        b1_blocks.append(jax.random.uniform(k2, (H,), jnp.float32, -lim1, lim1))
        w2_blocks.append(jax.random.uniform(k3, (H, hd), jnp.float32, -lim2, lim2))
        b2_blocks.append(jax.random.uniform(k4, (hd,), jnp.float32, -lim2, lim2))

    w1 = jnp.concatenate(w1_blocks, axis=1)                        # [F, 7H]
    b1 = jnp.concatenate(b1_blocks, axis=0)[None, :]               # [1, 7H]

    w2 = jnp.zeros((NHEADS * H, OUT_PAD), jnp.float32)             # block-diag, lane-padded
    off = 0
    for i, hd in enumerate(HEAD_DIMS):
        w2 = w2.at[i * H:(i + 1) * H, off:off + hd].set(w2_blocks[i])
        off += hd
    b2 = jnp.zeros((1, OUT_PAD), jnp.float32)
    b2 = b2.at[0, :OUT_TOTAL].set(jnp.concatenate(b2_blocks, axis=0))

    # weights fed to the MXU in bf16 (halves weight DMA bytes); biases / epilogue stay f32
    return w1.astype(jnp.bfloat16), b1, w2.astype(jnp.bfloat16), b2


if __name__ == "__main__":
    key = jax.random.PRNGKey(0)
    key, kx, kg = jax.random.split(key, 3)
    x = jax.random.normal(kx, (B, F), jnp.float32)
    gumbel_noise = jax.random.gumbel(kg, (B, OUT_PAD), jnp.float32)
    w1, b1, w2, b2 = init_params(key)

    outs = primitive_regressor(x, gumbel_noise, w1, b1, w2, b2, first_prim=False)
    shape, operation, translation, rotation, scale, blending, roundness = outs
    for t in outs:
        if t is not None:
            jax.block_until_ready(t)

    # light sanity checks on head semantics
    assert shape.shape == (B, NUM_SHAPES) and operation.shape == (B, NUM_OPS)
    assert translation.shape == (B, 3) and rotation.shape == (B, 4)
    assert scale.shape == (B, 3) and blending.shape == (B, 1) and roundness.shape == (B, 1)
    assert bool(jnp.all(jnp.sum(shape, axis=-1) == 1.0))            # exact one-hot
    assert bool(jnp.all(jnp.sum(operation, axis=-1) == 1.0))        # exact one-hot
    assert bool(jnp.all((scale >= DEFAULT_MIN_SCALE) & (scale <= DEFAULT_MAX_SCALE)))
    assert bool(jnp.all((blending >= DEFAULT_MIN_BLENDING) & (blending <= DEFAULT_MAX_BLENDING)))
    assert bool(jnp.all(jnp.abs(jnp.sum(rotation * rotation, axis=-1) - 1.0) < 1e-2))
    print("KERNEL_OK")
</pallas_src>

<mosaic_0001>
module attributes {stable_mosaic.version = 11 : i64} {
  func.func @_primitive_regressor_kernel(%arg0: i32, %arg1: memref<128x32xf32, #tpu.memory_space<vmem>>, %arg2: memref<128x128xf32, #tpu.memory_space<vmem>>, %arg3: memref<32x224xbf16, #tpu.memory_space<vmem>>, %arg4: memref<1x224xf32, #tpu.memory_space<vmem>>, %arg5: memref<224x128xbf16, #tpu.memory_space<vmem>>, %arg6: memref<1x128xf32, #tpu.memory_space<vmem>>, %arg7: memref<128x128xf32, #tpu.memory_space<vmem>>) attributes {dimension_semantics = [#tpu.dimension_semantics<parallel>], iteration_bounds = array<i64: 2>, scalar_prefetch = 0 : i64, scratch_operands = 0 : i64, tpu.core_type = #tpu.core_type<tc>, window_params = [{transform_indices = @transform_0, window_bounds = array<i64: 128, 32>}, {transform_indices = @transform_1, window_bounds = array<i64: 128, 128>}, {pipeline_mode = #tpu.pipeline_mode<synchronous>, transform_indices = @transform_2, window_bounds = array<i64: 32, 224>}, {pipeline_mode = #tpu.pipeline_mode<synchronous>, transform_indices = @transform_3, window_bounds = array<i64: 1, 224>}, {pipeline_mode = #tpu.pipeline_mode<synchronous>, transform_indices = @transform_4, window_bounds = array<i64: 224, 128>}, {pipeline_mode = #tpu.pipeline_mode<synchronous>, transform_indices = @transform_5, window_bounds = array<i64: 1, 128>}, {transform_indices = @transform_6, window_bounds = array<i64: 128, 128>}]} {
    %c0 = arith.constant 0 : index
    %c0_0 = arith.constant 0 : index
    %0 = vector.load %arg1[%c0, %c0_0] : memref<128x32xf32, #tpu.memory_space<vmem>>, vector<128x32xf32>
    %1 = arith.truncf %0 : vector<128x32xf32> to vector<128x32xbf16>
    %c0_1 = arith.constant 0 : index
    %c0_2 = arith.constant 0 : index
    %2 = vector.load %arg3[%c0_1, %c0_2] : memref<32x224xbf16, #tpu.memory_space<vmem>>, vector<32x224xbf16>
    %cst = arith.constant dense<0.000000e+00> : vector<128x224xf32>
    %3 = tpu.matmul %1, %2, %cst {dimension_numbers = #tpu.dot_dimension_numbers<[1], [0], [0], [1], [0, 0, 1, 1], [], []>} : vector<128x32xbf16>, vector<32x224xbf16>, vector<128x224xf32> -> vector<128x224xf32>
    %c0_3 = arith.constant 0 : index
    %c0_4 = arith.constant 0 : index
    %4 = vector.load %arg4[%c0_3, %c0_4] : memref<1x224xf32, #tpu.memory_space<vmem>>, vector<1x224xf32>
    %5 = vector.broadcast %4 : vector<1x224xf32> to vector<128x224xf32>
    %6 = arith.addf %3, %5 : vector<128x224xf32>
    %cst_5 = arith.constant 0.000000e+00 : f32
    %7 = vector.broadcast %cst_5 : f32 to vector<128x224xf32>
    %8 = arith.cmpf ogt, %6, %7 : vector<128x224xf32>
    %cst_6 = arith.constant 2.000000e-01 : f32
    %9 = vector.broadcast %cst_6 : f32 to vector<128x224xf32>
    %10 = arith.mulf %9, %6 : vector<128x224xf32>
    %11 = arith.select %8, %6, %10 : vector<128x224xi1>, vector<128x224xf32>
    %12 = arith.truncf %11 : vector<128x224xf32> to vector<128x224xbf16>
    %c0_7 = arith.constant 0 : index
    %c0_8 = arith.constant 0 : index
    %13 = vector.load %arg5[%c0_7, %c0_8] : memref<224x128xbf16, #tpu.memory_space<vmem>>, vector<224x128xbf16>
    %cst_9 = arith.constant dense<0.000000e+00> : vector<128x128xf32>
    %14 = tpu.matmul %12, %13, %cst_9 {dimension_numbers = #tpu.dot_dimension_numbers<[1], [0], [0], [1], [0, 0, 1, 1], [], []>} : vector<128x224xbf16>, vector<224x128xbf16>, vector<128x128xf32> -> vector<128x128xf32>
    %c0_10 = arith.constant 0 : index
    %c0_11 = arith.constant 0 : index
    %15 = vector.load %arg6[%c0_10, %c0_11] : memref<1x128xf32, #tpu.memory_space<vmem>>, vector<1x128xf32>
    %16 = vector.broadcast %15 : vector<1x128xf32> to vector<128x128xf32>
    %17 = arith.addf %14, %16 : vector<128x128xf32>
    %18 = tpu.iota {dimensions = array<i32: 1>} : vector<128x128xi32>
    %c4_i32 = arith.constant 4 : i32
    %19 = vector.broadcast %c4_i32 : i32 to vector<128x128xi32>
    %20 = arith.cmpi slt, %18, %19 : vector<128x128xi32>
    %c4_i32_12 = arith.constant 4 : i32
    %21 = vector.broadcast %c4_i32_12 : i32 to vector<128x128xi32>
    %22 = arith.cmpi sge, %18, %21 : vector<128x128xi32>
    %c7_i32 = arith.constant 7 : i32
    %23 = vector.broadcast %c7_i32 : i32 to vector<128x128xi32>
    %24 = arith.cmpi slt, %18, %23 : vector<128x128xi32>
    %25 = arith.andi %22, %24 : vector<128x128xi1>
    %c7_i32_13 = arith.constant 7 : i32
    %26 = vector.broadcast %c7_i32_13 : i32 to vector<128x128xi32>
    %27 = arith.cmpi sge, %18, %26 : vector<128x128xi32>
    %c10_i32 = arith.constant 10 : i32
    %28 = vector.broadcast %c10_i32 : i32 to vector<128x128xi32>
    %29 = arith.cmpi slt, %18, %28 : vector<128x128xi32>
    %30 = arith.andi %27, %29 : vector<128x128xi1>
    %c10_i32_14 = arith.constant 10 : i32
    %31 = vector.broadcast %c10_i32_14 : i32 to vector<128x128xi32>
    %32 = arith.cmpi sge, %18, %31 : vector<128x128xi32>
    %c14_i32 = arith.constant 14 : i32
    %33 = vector.broadcast %c14_i32 : i32 to vector<128x128xi32>
    %34 = arith.cmpi slt, %18, %33 : vector<128x128xi32>
    %35 = arith.andi %32, %34 : vector<128x128xi1>
    %c14_i32_15 = arith.constant 14 : i32
    %36 = vector.broadcast %c14_i32_15 : i32 to vector<128x128xi32>
    %37 = arith.cmpi sge, %18, %36 : vector<128x128xi32>
    %c17_i32 = arith.constant 17 : i32
    %38 = vector.broadcast %c17_i32 : i32 to vector<128x128xi32>
    %39 = arith.cmpi slt, %18, %38 : vector<128x128xi32>
    %40 = arith.andi %37, %39 : vector<128x128xi1>
    %c17_i32_16 = arith.constant 17 : i32
    %41 = vector.broadcast %c17_i32_16 : i32 to vector<128x128xi32>
    %42 = arith.cmpi eq, %18, %41 : vector<128x128xi32>
    %c18_i32 = arith.constant 18 : i32
    %43 = vector.broadcast %c18_i32 : i32 to vector<128x128xi32>
    %44 = arith.cmpi eq, %18, %43 : vector<128x128xi32>
    %c0_17 = arith.constant 0 : index
    %c0_18 = arith.constant 0 : index
    %45 = vector.load %arg2[%c0_17, %c0_18] : memref<128x128xf32, #tpu.memory_space<vmem>>, vector<128x128xf32>
    %46 = arith.addf %17, %45 : vector<128x128xf32>
    %cst_19 = arith.constant 0xFF800000 : f32
    %47 = vector.broadcast %cst_19 : f32 to vector<128x128xf32>
    %48 = arith.select %20, %46, %47 : vector<128x128xi1>, vector<128x128xf32>
    %cst_20 = arith.constant dense<0xFF800000> : vector<128xf32>
    %49 = vector.multi_reduction <maximumf>, %48, %cst_20 [1] : vector<128x128xf32> to vector<128xf32>
    %50 = vector.shape_cast %49 : vector<128xf32> to vector<128x1xf32>
    %51 = vector.broadcast %50 : vector<128x1xf32> to vector<128x128xf32>
    %52 = arith.cmpf oge, %48, %51 : vector<128x128xf32>
    %53 = arith.andi %20, %52 : vector<128x128xi1>
    %c128_i32 = arith.constant 128 : i32
    %54 = vector.broadcast %c128_i32 : i32 to vector<128x128xi32>
    %55 = arith.select %53, %18, %54 : vector<128x128xi1>, vector<128x128xi32>
    %cst_21 = arith.constant dense<2147483647> : vector<128xi32>
    %56 = vector.multi_reduction <minsi>, %55, %cst_21 [1] : vector<128x128xi32> to vector<128xi32>
    %57 = vector.shape_cast %56 : vector<128xi32> to vector<128x1xi32>
    %58 = vector.broadcast %57 : vector<128x1xi32> to vector<128x128xi32>
    %59 = arith.cmpi eq, %18, %58 : vector<128x128xi32>
    %60 = arith.extui %59 : vector<128x128xi1> to vector<128x128xi32>
    %61 = arith.sitofp %60 : vector<128x128xi32> to vector<128x128xf32>
    %cst_22 = arith.constant 0xFF800000 : f32
    %62 = vector.broadcast %cst_22 : f32 to vector<128x128xf32>
    %63 = arith.select %25, %46, %62 : vector<128x128xi1>, vector<128x128xf32>
    %cst_23 = arith.constant dense<0xFF800000> : vector<128xf32>
    %64 = vector.multi_reduction <maximumf>, %63, %cst_23 [1] : vector<128x128xf32> to vector<128xf32>
    %65 = vector.shape_cast %64 : vector<128xf32> to vector<128x1xf32>
    %66 = vector.broadcast %65 : vector<128x1xf32> to vector<128x128xf32>
    %67 = arith.cmpf oge, %63, %66 : vector<128x128xf32>
    %68 = arith.andi %25, %67 : vector<128x128xi1>
    %c128_i32_24 = arith.constant 128 : i32
    %69 = vector.broadcast %c128_i32_24 : i32 to vector<128x128xi32>
    %70 = arith.select %68, %18, %69 : vector<128x128xi1>, vector<128x128xi32>
    %cst_25 = arith.constant dense<2147483647> : vector<128xi32>
    %71 = vector.multi_reduction <minsi>, %70, %cst_25 [1] : vector<128x128xi32> to vector<128xi32>
    %72 = vector.shape_cast %71 : vector<128xi32> to vector<128x1xi32>
    %73 = vector.broadcast %72 : vector<128x1xi32> to vector<128x128xi32>
    %74 = arith.cmpi eq, %18, %73 : vector<128x128xi32>
    %75 = arith.extui %74 : vector<128x128xi1> to vector<128x128xi32>
    %76 = arith.sitofp %75 : vector<128x128xi32> to vector<128x128xf32>
    %77 = arith.mulf %17, %17 : vector<128x128xf32>
    %cst_26 = arith.constant 0.000000e+00 : f32
    %78 = vector.broadcast %cst_26 : f32 to vector<128x128xf32>
    %79 = arith.select %35, %77, %78 : vector<128x128xi1>, vector<128x128xf32>
    %cst_27 = arith.constant dense<0.000000e+00> : vector<128xf32>
    %80 = vector.multi_reduction <add>, %79, %cst_27 [1] : vector<128x128xf32> to vector<128xf32>
    %81 = vector.shape_cast %80 : vector<128xf32> to vector<128x1xf32>
    %82 = math.sqrt %81 : vector<128x1xf32>
    %cst_28 = arith.constant 9.99999996E-13 : f32
    %83 = vector.broadcast %cst_28 : f32 to vector<128x1xf32>
    %84 = arith.maximumf %82, %83 : vector<128x1xf32>
    %85 = vector.broadcast %84 : vector<128x1xf32> to vector<128x128xf32>
    %86 = arith.divf %17, %85 : vector<128x128xf32>
    %87 = arith.negf %17 : vector<128x128xf32>
    %88 = math.exp %87 : vector<128x128xf32>
    %cst_29 = arith.constant 1.000000e+00 : f32
    %89 = vector.broadcast %cst_29 : f32 to vector<128x128xf32>
    %90 = arith.addf %89, %88 : vector<128x128xf32>
    %91 = arith.divf %89, %90 : vector<128x128xf32>
    %92 = math.tanh %17 : vector<128x128xf32>
    %cst_30 = arith.constant 1.000000e+00 : f32
    %93 = vector.broadcast %cst_30 : f32 to vector<128x128xf32>
    %94 = arith.mulf %92, %93 : vector<128x128xf32>
    %cst_31 = arith.constant 9.950000e-01 : f32
    %95 = vector.broadcast %cst_31 : f32 to vector<128x128xf32>
    %96 = arith.mulf %91, %95 : vector<128x128xf32>
    %cst_32 = arith.constant 5.000000e-03 : f32
    %97 = vector.broadcast %cst_32 : f32 to vector<128x128xf32>
    %98 = arith.addf %96, %97 : vector<128x128xf32>
    %cst_33 = arith.constant 9.990000e-01 : f32
    %99 = vector.broadcast %cst_33 : f32 to vector<128x128xf32>
    %100 = arith.mulf %91, %99 : vector<128x128xf32>
    %cst_34 = arith.constant 1.000000e-03 : f32
    %101 = vector.broadcast %cst_34 : f32 to vector<128x128xf32>
    %102 = arith.addf %100, %101 : vector<128x128xf32>
    %cst_35 = arith.constant 0.000000e+00 : f32
    %103 = vector.broadcast %cst_35 : f32 to vector<128x128xf32>
    %104 = arith.select %44, %91, %103 : vector<128x128xi1>, vector<128x128xf32>
    %105 = arith.select %42, %102, %104 : vector<128x128xi1>, vector<128x128xf32>
    %106 = arith.select %40, %98, %105 : vector<128x128xi1>, vector<128x128xf32>
    %107 = arith.select %35, %86, %106 : vector<128x128xi1>, vector<128x128xf32>
    %108 = arith.select %30, %94, %107 : vector<128x128xi1>, vector<128x128xf32>
    %109 = arith.select %25, %76, %108 : vector<128x128xi1>, vector<128x128xf32>
    %110 = arith.select %20, %61, %109 : vector<128x128xi1>, vector<128x128xf32>
    %c0_36 = arith.constant 0 : index
    %c0_37 = arith.constant 0 : index
    %111 = vector.load %arg7[%c0_36, %c0_37] : memref<128x128xf32, #tpu.memory_space<vmem>>, vector<128x128xf32>
    tpu.vector_store %arg7[%c0_36, %c0_37], %110 {strides = array<i32>} : memref<128x128xf32, #tpu.memory_space<vmem>>, vector<128x128xf32>,
    return
  }
  func.func @transform_0(%arg0: i32) -> (i32, i32) {
    %c0_i32 = arith.constant 0 : i32
    %c0_i32_0 = arith.constant 0 : i32
    return %arg0, %c0_i32 : i32, i32
  }
  func.func @transform_1(%arg0: i32) -> (i32, i32) {
    %c0_i32 = arith.constant 0 : i32
    %c0_i32_0 = arith.constant 0 : i32
    return %arg0, %c0_i32 : i32, i32
  }
  func.func @transform_2(%arg0: i32) -> (i32, i32) {
    %c0_i32 = arith.constant 0 : i32
    %c0_i32_0 = arith.constant 0 : i32
    %c0_i32_1 = arith.constant 0 : i32
    return %c0_i32, %c0_i32_0 : i32, i32
  }
  func.func @transform_3(%arg0: i32) -> (i32, i32) {
    %c0_i32 = arith.constant 0 : i32
    %c0_i32_0 = arith.constant 0 : i32
    %c0_i32_1 = arith.constant 0 : i32
    return %c0_i32, %c0_i32_0 : i32, i32
  }
  func.func @transform_4(%arg0: i32) -> (i32, i32) {
    %c0_i32 = arith.constant 0 : i32
    %c0_i32_0 = arith.constant 0 : i32
    %c0_i32_1 = arith.constant 0 : i32
    return %c0_i32, %c0_i32_0 : i32, i32
  }
  func.func @transform_5(%arg0: i32) -> (i32, i32) {
    %c0_i32 = arith.constant 0 : i32
    %c0_i32_0 = arith.constant 0 : i32
    %c0_i32_1 = arith.constant 0 : i32
    return %c0_i32, %c0_i32_0 : i32, i32
  }
  func.func @transform_6(%arg0: i32) -> (i32, i32) {
    %c0_i32 = arith.constant 0 : i32
    %c0_i32_0 = arith.constant 0 : i32
    return %arg0, %c0_i32 : i32, i32
  }
}

</mosaic_0001>

<llo_original>
// kernel: primitive_regressor.1
$region0: #{primitive_regressor.1}
  #allocation0 [shape = 'u32[]', space=smem, size = 0x4, offset = 0x4, fixed_abs, tag = 'smem constant byte address 0x4 - core index']
  #allocation1 [shape = 'u32[144,128]{1,0:T(1,128)}', space=vmem, size = 0x12000, scoped, tag = 'internal scratch']
  %s0 = inlined_call_operand.vmem [shape: f32[256,32], index: 0, kind: input, shape index: {}]
  %s1 = inlined_call_operand.vmem [shape: f32[256,128], index: 1, kind: input, shape index: {}]
  %s2 = inlined_call_operand.vmem [shape: bf16[32,224], index: 2, kind: input, shape index: {}]
  %s3 = inlined_call_operand.vmem [shape: f32[1,224], index: 3, kind: input, shape index: {}]
  %s4 = inlined_call_operand.hbm [shape: bf16[224,128], index: 4, kind: input, shape index: {}]
  %s5 = inlined_call_operand.vmem [shape: f32[1,128], index: 5, kind: input, shape index: {}]
  %s6 = inlined_call_operand.vmem [shape: f32[256,128], index: 6, kind: output, shape index: {}]
  %s7 = sld [smem:[#allocation0]]
  $region61: #{primitive_regressor.1} parent=0
    _
  %s9 = ssub.s32 1, %s7
  %s10 = scalar_select 0, %s9, %s7
  $region1: #{primitive_regressor.1} parent=0
    #allocation2 [shape = 'u8[57344]{0}', space=vmem, size = 0xe000, scoped, tag = 'input window, operand 4, single buffered']
    #allocation3 [shape = 's32[2]{0}', space=sflag, size = 0x8, scoped, tag = 'scoped memory for primitive_regressor.1']
    %11 = vsyncpa [#allocation3], 0
    loop: start=0, step=1, limit=4
    $region2: #{primitive_regressor.1} parent=1 // loop_pre_header
      _
    $region3: #{primitive_regressor.1} parent=1 // loop_header
      %s13 = sphi 0, %s17
      %p14 = scmp.ge.s32.totalorder %s13, 4
      %s23 = sphi 0, %s25
      %s26 = sphi 0, %s23
      %s27 = sphi 0, %s26
      %s43 = sphi 0, %s27
      %s49 = sphi 0, %s51
      %s52 = sphi 0, %s49
      %s53 = sphi 0, %s52
      %s69 = sphi 0, %s53
      %s73 = sphi 0, %s73
      %s75 = sphi 0, %s73
      %s76 = sphi 0, %s75
      %s90 = sphi 0, %s76
      %s94 = sphi 0, %s94
      %s96 = sphi 0, %s94
      %s97 = sphi 0, %s96
      %s111 = sphi 0, %s97
      %s115 = sphi 0, %s115
      %s117 = sphi 0, %s115
      %s118 = sphi 0, %s117
      %s132 = sphi 0, %s118
      %s136 = sphi 0, %s136
      %s138 = sphi 0, %s136
      %s139 = sphi 0, %s138
      %s153 = sphi 0, %s139
      %s159 = sphi 0, %s161
      %s162 = sphi 0, %s159
      %s163 = sphi 0, %s162
      %s179 = sphi 0, %s163
    $region4: #{primitive_regressor.1} parent=1 // loop_header_branch
      %16 = sbr.rel (%p14) target = $region8
    $region5: #{primitive_regressor.1} parent=1 // loop_body
      %s18 = ssub.s32 %s13, 1
      %s19 = ssub.s32 %s13, 2
      %s20 = sadd.s32 %s13, 1
      %s21 = ssub.s32 %s13, %s20
      %p22 = scmp.eq.s32.totalorder %s21, 0
      %s24 = sadd.s32 %s23, 1
      %s25 = scalar_select %p22, %s23, %s24
      %p28 = pneg %p22
      %p29 = scmp.eq.s32.totalorder %s13, 1
      %p30 = por %p28, %p29
      %p31 = scmp.ne.s32.totalorder %s23, %s26
      %p32 = scmp.eq.s32.totalorder %s13, 0
      %p33 = por %p31, %p32
      %p34 = scmp.ne.s32.totalorder %s23, %s26
      %p35 = scmp.eq.s32.totalorder %s18, 1
      %p36 = por %p34, %p35
      %p37 = scmp.ne.s32.totalorder %s26, %s27
      %p38 = scmp.eq.s32.totalorder %s18, 0
      %p39 = por %p37, %p38
      %p40 = scmp.ne.s32.totalorder %s26, %s27
      %p41 = scmp.eq.s32.totalorder %s19, 1
      %p42 = por %p40, %p41
      %p44 = scmp.ne.s32.totalorder %s27, %s43
      %p45 = scmp.eq.s32.totalorder %s19, 0
      %p46 = por %p44, %p45
      %s47 = ssub.s32 %s13, %s20
      %p48 = scmp.eq.s32.totalorder %s47, 0
      %s50 = sadd.s32 %s49, 1
      %s51 = scalar_select %p48, %s49, %s50
      %p54 = pneg %p48
      %p55 = scmp.eq.s32.totalorder %s13, 1
      %p56 = por %p54, %p55
      %p57 = scmp.ne.s32.totalorder %s49, %s52
      %p58 = scmp.eq.s32.totalorder %s13, 0
      %p59 = por %p57, %p58
      %p60 = scmp.ne.s32.totalorder %s49, %s52
      %p61 = scmp.eq.s32.totalorder %s18, 1
      %p62 = por %p60, %p61
      %p63 = scmp.ne.s32.totalorder %s52, %s53
      %p64 = scmp.eq.s32.totalorder %s18, 0
      %p65 = por %p63, %p64
      %p66 = scmp.ne.s32.totalorder %s52, %s53
      %p67 = scmp.eq.s32.totalorder %s19, 1
      %p68 = por %p66, %p67
      %p70 = scmp.ne.s32.totalorder %s53, %s69
      %p71 = scmp.eq.s32.totalorder %s19, 0
      %p72 = por %p70, %p71
      %s74 = sadd.s32 %s73, 1
      %p77 = scmp.eq.s32.totalorder %s13, 1
      %p78 = scmp.ne.s32.totalorder %s73, %s75
      %p79 = scmp.eq.s32.totalorder %s13, 0
      %p80 = por %p78, %p79
      %p81 = scmp.ne.s32.totalorder %s73, %s75
      %p82 = scmp.eq.s32.totalorder %s18, 1
      %p83 = por %p81, %p82
      %p84 = scmp.ne.s32.totalorder %s75, %s76
      %p85 = scmp.eq.s32.totalorder %s18, 0
      %p86 = por %p84, %p85
      %p87 = scmp.ne.s32.totalorder %s75, %s76
      %p88 = scmp.eq.s32.totalorder %s19, 1
      %p89 = por %p87, %p88
      %p91 = scmp.ne.s32.totalorder %s76, %s90
      %p92 = scmp.eq.s32.totalorder %s19, 0
      %p93 = por %p91, %p92
      %s95 = sadd.s32 %s94, 1
      %p98 = scmp.eq.s32.totalorder %s13, 1
      %p99 = scmp.ne.s32.totalorder %s94, %s96
      %p100 = scmp.eq.s32.totalorder %s13, 0
      %p101 = por %p99, %p100
      %p102 = scmp.ne.s32.totalorder %s94, %s96
      %p103 = scmp.eq.s32.totalorder %s18, 1
      %p104 = por %p102, %p103
      %p105 = scmp.ne.s32.totalorder %s96, %s97
      %p106 = scmp.eq.s32.totalorder %s18, 0
      %p107 = por %p105, %p106
      %p108 = scmp.ne.s32.totalorder %s96, %s97
      %p109 = scmp.eq.s32.totalorder %s19, 1
      %p110 = por %p108, %p109
      %p112 = scmp.ne.s32.totalorder %s97, %s111
      %p113 = scmp.eq.s32.totalorder %s19, 0
      %p114 = por %p112, %p113
      %s116 = sadd.s32 %s115, 1
      %p119 = scmp.eq.s32.totalorder %s13, 1
      %p120 = scmp.ne.s32.totalorder %s115, %s117
      %p121 = scmp.eq.s32.totalorder %s13, 0
      %p122 = por %p120, %p121
      %p123 = scmp.ne.s32.totalorder %s115, %s117
      %p124 = scmp.eq.s32.totalorder %s18, 1
      %p125 = por %p123, %p124
      %p126 = scmp.ne.s32.totalorder %s117, %s118
      %p127 = scmp.eq.s32.totalorder %s18, 0
      %p128 = por %p126, %p127
      %p129 = scmp.ne.s32.totalorder %s117, %s118
      %p130 = scmp.eq.s32.totalorder %s19, 1
      %p131 = por %p129, %p130
      %p133 = scmp.ne.s32.totalorder %s118, %s132
      %p134 = scmp.eq.s32.totalorder %s19, 0
      %p135 = por %p133, %p134
      %s137 = sadd.s32 %s136, 1
      %p140 = scmp.eq.s32.totalorder %s13, 1
      %p141 = scmp.ne.s32.totalorder %s136, %s138
      %p142 = scmp.eq.s32.totalorder %s13, 0
      %p143 = por %p141, %p142
      %p144 = scmp.ne.s32.totalorder %s136, %s138
      %p145 = scmp.eq.s32.totalorder %s18, 1
      %p146 = por %p144, %p145
      %p147 = scmp.ne.s32.totalorder %s138, %s139
      %p148 = scmp.eq.s32.totalorder %s18, 0
      %p149 = por %p147, %p148
      %p150 = scmp.ne.s32.totalorder %s138, %s139
      %p151 = scmp.eq.s32.totalorder %s19, 1
      %p152 = por %p150, %p151
      %p154 = scmp.ne.s32.totalorder %s139, %s153
      %p155 = scmp.eq.s32.totalorder %s19, 0
      %p156 = por %p154, %p155
      %s157 = ssub.s32 %s13, %s20
      %p158 = scmp.eq.s32.totalorder %s157, 0
      %s160 = sadd.s32 %s159, 1
      %s161 = scalar_select %p158, %s159, %s160
      %p164 = pneg %p158
      %p165 = scmp.eq.s32.totalorder %s13, 1
      %p166 = por %p164, %p165
      %p167 = scmp.ne.s32.totalorder %s159, %s162
      %p168 = scmp.eq.s32.totalorder %s13, 0
      %p169 = por %p167, %p168
      %p170 = scmp.ne.s32.totalorder %s159, %s162
      %p171 = scmp.eq.s32.totalorder %s18, 1
      %p172 = por %p170, %p171
      %p173 = scmp.ne.s32.totalorder %s162, %s163
      %p174 = scmp.eq.s32.totalorder %s18, 0
      %p175 = por %p173, %p174
      %p176 = scmp.ne.s32.totalorder %s162, %s163
      %p177 = scmp.eq.s32.totalorder %s19, 1
      %p178 = por %p176, %p177
      %p180 = scmp.ne.s32.totalorder %s163, %s179
      %p181 = scmp.eq.s32.totalorder %s19, 0
      %p182 = por %p180, %p181
      %p183 = scmp.le.s32.totalorder 1, %s13
      %p184 = scmp.lt.s32.totalorder %s13, 3
      %p185 = pnand %p183, %p184
      %p186 = pneg %p185
      // Predicated region
      $region9: #{primitive_regressor.1} parent=5 // pred_check
        _
      $region10: #{primitive_regressor.1} parent=5 // pred_check_branch
        %188 = sbr.rel (%p185) target = $region12
      $region11: #{primitive_regressor.1} parent=5 // pred_region
        %s189 = ssub.s32 %s13, 1
        // Predicated region
        $region13: #{primitive_regressor.1} parent=11 // pred_check
          %p190 = pneg %p86
        $region14: #{primitive_regressor.1} parent=11 // pred_check_branch
          %192 = sbr.rel (%p190) target = $region16
        $region15: #{primitive_regressor.1} parent=11 // pred_region
          _
        $region16: #{primitive_regressor.1} parent=11 // pred_fallthru
          _
        // Predicated region
        $region17: #{primitive_regressor.1} parent=11 // pred_check
          %p193 = pneg %p107
        $region18: #{primitive_regressor.1} parent=11 // pred_check_branch
          %195 = sbr.rel (%p193) target = $region20
        $region19: #{primitive_regressor.1} parent=11 // pred_region
          _
        $region20: #{primitive_regressor.1} parent=11 // pred_fallthru
          _
        // Predicated region
        $region21: #{primitive_regressor.1} parent=11 // pred_check
          %p196 = pneg %p128
        $region22: #{primitive_regressor.1} parent=11 // pred_check_branch
          %198 = sbr.rel (%p196) target = $region24
        $region23: #{primitive_regressor.1} parent=11 // pred_region
          %s200 = ssub.s32 1792, 1792
          %201 = vsyncadd [#allocation3], %s200
          %s202 = sshll.u32 [#allocation2], 4
          %s203 = int_to_ptr.vmem [resolvable:$true] %s202
          %208 = dma.hbm_to_vmem [thread:$0]  %s4, 1792, %s203, [#allocation3], 64, 64, 4
        $region24: #{primitive_regressor.1} parent=11 // pred_fallthru
          _
        // Predicated region
        $region25: #{primitive_regressor.1} parent=11 // pred_check
          %p209 = pneg %p149
        $region26: #{primitive_regressor.1} parent=11 // pred_check_branch
          %211 = sbr.rel (%p209) target = $region28
        $region27: #{primitive_regressor.1} parent=11 // pred_region
          _
        $region28: #{primitive_regressor.1} parent=11 // pred_fallthru
          _
      $region12: #{primitive_regressor.1} parent=5 // pred_fallthru
        _
      %p212 = scmp.lt.s32.totalorder %s13, 2
      // Predicated region
      $region29: #{primitive_regressor.1} parent=5 // pred_check
        %p213 = pneg %p212
      $region30: #{primitive_regressor.1} parent=5 // pred_check_branch
        %215 = sbr.rel (%p213) target = $region32
      $region31: #{primitive_regressor.1} parent=5 // pred_region
        // Predicated region
        $region33: #{primitive_regressor.1} parent=31 // pred_check
          %p216 = pneg %p33
        $region34: #{primitive_regressor.1} parent=31 // pred_check_branch
          %218 = sbr.rel (%p216) target = $region36
        $region35: #{primitive_regressor.1} parent=31 // pred_region
          %s219 = smul.u32 16, %s13
          %p220 = scmp.lt.s32.totalorder %s219, 31
          %s221 = scalar_select %p220, %s219, 31
          %s222 = smul.addr %s221, 8
          %s223 = scalar_lea.vmem %s0, %s222
          %s224 = smul.u32 16, %s13
        $region36: #{primitive_regressor.1} parent=31 // pred_fallthru
          _
        // Predicated region
        $region37: #{primitive_regressor.1} parent=31 // pred_check
          %p225 = pneg %p59
        $region38: #{primitive_regressor.1} parent=31 // pred_check_branch
          %227 = sbr.rel (%p225) target = $region40
        $region39: #{primitive_regressor.1} parent=31 // pred_region
          %s228 = smul.u32 16, %s13
          %p229 = scmp.lt.s32.totalorder %s228, 31
          %s230 = scalar_select %p229, %s228, 31
          %s231 = smul.addr %s230, 8
          %s232 = scalar_lea.vmem %s1, %s231
          %s233 = smul.u32 16, %s13
        $region40: #{primitive_regressor.1} parent=31 // pred_fallthru
          _
      $region32: #{primitive_regressor.1} parent=5 // pred_fallthru
        _
      %p234 = scmp.le.s32.totalorder 1, %s13
      %p235 = scmp.lt.s32.totalorder %s13, 3
      %p236 = pnand %p234, %p235
      %p237 = pneg %p236
      // Predicated region
      $region41: #{primitive_regressor.1} parent=5 // pred_check
        _
      $region42: #{primitive_regressor.1} parent=5 // pred_check_branch
        %239 = sbr.rel (%p236) target = $region44
      $region43: #{primitive_regressor.1} parent=5 // pred_region
        %s240 = ssub.s32 %s13, 1
        // Predicated region
        $region45: #{primitive_regressor.1} parent=43 // pred_check
          %p241 = pneg %p128
        $region46: #{primitive_regressor.1} parent=43 // pred_check_branch
          %243 = sbr.rel (%p241) target = $region48
        $region47: #{primitive_regressor.1} parent=43 // pred_region
          %244 = dma.done [#allocation3], 1792
        $region48: #{primitive_regressor.1} parent=43 // pred_fallthru
          _
        %s245 = smul.u32 16, %s18
        %p246 = scmp.lt.s32.totalorder %s245, 31
        %s247 = scalar_select %p246, %s245, 31
        %s248 = smul.addr %s247, 8
        %s249 = scalar_lea.vmem %s0, %s248
        %p250 = pneg %p39
        %p251 = pneg %p36
        %s252 = smul.u32 16, %s18
        %p253 = scmp.lt.s32.totalorder %s252, 31
        %s254 = scalar_select %p253, %s252, 31
        %s255 = smul.addr %s254, 8
        %s256 = scalar_lea.vmem %s1, %s255
        %p257 = pneg %p65
        %p258 = pneg %p62
        %p259 = pneg %p86
        %p260 = pneg %p83
        %p261 = pneg %p107
        %p262 = pneg %p104
        %p263 = pneg %p128
        %p264 = pneg %p125
        %p265 = pneg %p149
        %p266 = pneg %p146
        %p267 = pneg %p175
        %p268 = pneg %p172
        %s269 = smul.u32 16, %s18
        %p270 = scmp.lt.s32.totalorder %s269, 31
        %s271 = scalar_select %p270, %s269, 31
        %s272 = smul.addr %s271, 8
        %s273 = scalar_lea.vmem %s6, %s272
        %s274 = smul.u32 16, %s18
        %p275 = scmp.lt.s32.totalorder %s274, 31
        %s276 = scalar_select %p275, %s274, 31
        %s277 = smul.addr %s276, 8
        %s278 = scalar_lea.vmem %s0, %s277
        %s279 = smul.u32 16, %s18
        %s280 = smul.u32 16, %s18
        %p281 = scmp.lt.s32.totalorder %s280, 31
        %s282 = scalar_select %p281, %s280, 31
        %s283 = smul.addr %s282, 8
        %s284 = scalar_lea.vmem %s1, %s283
        %s285 = smul.u32 16, %s18
        %s286 = smul.u32 16, %s18
        %p287 = scmp.lt.s32.totalorder %s286, 31
        %s288 = scalar_select %p287, %s286, 31
        %s289 = smul.addr %s288, 8
        %s290 = scalar_lea.vmem %s6, %s289
        %s291 = smul.u32 16, %s18
        %v293 = vld [vmem:[%s278] sm:$0xff]
        %v294 = vld [vmem:[%s278 + $0x8] sm:$0xff]
        %v295 = vld [vmem:[%s278 + $0x10] sm:$0xff]
        %v296 = vld [vmem:[%s278 + $0x18] sm:$0xff]
        %v297 = vld [vmem:[%s278 + $0x20] sm:$0xff]
        %v298 = vld [vmem:[%s278 + $0x28] sm:$0xff]
        %v299 = vld [vmem:[%s278 + $0x30] sm:$0xff]
        %v300 = vld [vmem:[%s278 + $0x38] sm:$0xff]
        %v301 = vld [vmem:[%s278 + $0x40] sm:$0xff]
        %v302 = vld [vmem:[%s278 + $0x48] sm:$0xff]
        %v303 = vld [vmem:[%s278 + $0x50] sm:$0xff]
        %v304 = vld [vmem:[%s278 + $0x58] sm:$0xff]
        %v305 = vld [vmem:[%s278 + $0x60] sm:$0xff]
        %v306 = vld [vmem:[%s278 + $0x68] sm:$0xff]
        %v307 = vld [vmem:[%s278 + $0x70] sm:$0xff]
        %v308 = vld [vmem:[%s278 + $0x78] sm:$0xff]
        %v309 = vpack.c.bf16 %v294, %v293
        %v310 = vpack.c.bf16 %v296, %v295
        %v311 = vpack.c.bf16 %v298, %v297
        %v312 = vpack.c.bf16 %v300, %v299
        %v313 = vpack.c.bf16 %v302, %v301
        %v314 = vpack.c.bf16 %v304, %v303
        %v315 = vpack.c.bf16 %v306, %v305
        %v316 = vpack.c.bf16 %v308, %v307
        %v317 = vld [vmem:[%s2] sm:$0xff]
        %v318 = vld [vmem:[%s2 + $0x8] sm:$0xff]
        %v319 = vld [vmem:[%s2 + $0x10] sm:$0xff]
        %v320 = vld [vmem:[%s2 + $0x18] sm:$0xff]
        %v321 = vld [vmem:[%s3] sm:$0x3]
        %v323 = vlaneseq
        %v324 = vshrl.u32 %v323, 7
        %v325 = vsub.s32 0, %v324
        %v326 = vrot.slane %v321, %v325
        %v327 = vlaneseq
        %v328 = vshrl.u32 %v327, 7
        %v329 = vsub.s32 1, %v328
        %v330 = vrot.slane %v321, %v329
        %v337 = vunpack.c.l.b16 %v317
        %v338 = vunpack.c.h.b16 %v317
        %v339 = vunpack.c.l.b16 %v318
        %v340 = vunpack.c.h.b16 %v318
        %v341 = vunpack.c.l.b16 %v319
        %v342 = vunpack.c.h.b16 %v319
        %v343 = vunpack.c.l.b16 %v320
        %v344 = vunpack.c.h.b16 %v320
        %v345 = vpack.c.b16 %v339, %v337
        %v346 = vpack.c.b16 %v340, %v338
        %v347 = vpack.c.b16 %v343, %v341
        %v348 = vpack.c.b16 %v344, %v342
        %vm353 = vcmask 261120
        %v355 = vsel %vm353, %v309, 0
        %v358 = vsel %vm353, %v310, 0
        %v361 = vsel %vm353, %v311, 0
        %v364 = vsel %vm353, %v312, 0
        %v367 = vsel %vm353, %v313, 0
        %v370 = vsel %vm353, %v314, 0
        %v373 = vsel %vm353, %v315, 0
        %v376 = vsel %vm353, %v316, 0
        %378 = vmatprep.subr.bf16.mxu0 %v346
        %379 = vmatpush1.bf16.msra.mxu0 %v345
        %380 = vmatprep.subr.bf16.mxu0 %v348
        %381 = vmatpush1.bf16.msra.mxu0 %v347
        %382 = vmatprep.subr.bf16.mxu0 0
        %383 = vmatpush1.bf16.msra.mxu0 0
        %384 = vmatprep.subr.bf16.mxu0 0
        %385 = vmatpush1.bf16.msra.mxu0 0
        %386 = vmatprep.subr.bf16.mxu0 0
        %387 = vmatpush1.bf16.msra.mxu0 0
        %388 = vmatprep.subr.bf16.mxu0 0
        %389 = vmatpush1.bf16.msra.mxu0 0
        %390 = vmatprep.subr.bf16.mxu0 0
        %391 = vmatpush1.bf16.msra.mxu0 0
        %392 = vmatprep.subr.bf16.mxu0 0
        %393 = vmatpush1.bf16.msra.mxu0 0
        %394 = vmatprep.subr.bf16.mxu0 0
        %395 = vmatpush1.bf16.msra.mxu0 0
        %396 = vmatprep.subr.bf16.mxu0 0
        %397 = vmatpush1.bf16.msra.mxu0 0
        %398 = vmatprep.subr.bf16.mxu0 0
        %399 = vmatpush1.bf16.msra.mxu0 0
        %400 = vmatprep.subr.bf16.mxu0 0
        %401 = vmatpush1.bf16.msra.mxu0 0
        %402 = vmatprep.subr.bf16.mxu0 0
        %403 = vmatpush1.bf16.msra.mxu0 0
        %404 = vmatprep.subr.bf16.mxu0 0
        %405 = vmatpush1.bf16.msra.mxu0 0
        %406 = vmatprep.subr.bf16.mxu0 0
        %407 = vmatpush1.bf16.msra.mxu0 0
        %408 = vmatprep.subr.bf16.mxu0 0
        %409 = vmatpush1.bf16.msra.mxu0 0
        %410 = vmatprep.mubr.bf16.mxu0 0
        %411 = vmatmul.mubr.bf16.gmra.mrb[0].mxu0 %v355
        %v412 = vpop.f32.mrb[0].mxu0
        %v413 = vadd.f32 %v326, %v412
        %v414 = vpop.f32.mrb[0].mxu0
        %v415 = vadd.f32 %v330, %v414
        %v416 = vpop.f32.mrb[0].mxu0
        %v417 = vadd.f32 %v326, %v416
        %v418 = vpop.f32.mrb[0].mxu0
        %v419 = vadd.f32 %v330, %v418
        %420 = vmatprep.mubr.bf16.mxu0 0
        %421 = vmatmul.mubr.bf16.gmra.mrb[0].mxu0 %v358
        %v422 = vpop.f32.mrb[0].mxu0
        %v423 = vadd.f32 %v326, %v422
        %v424 = vpop.f32.mrb[0].mxu0
        %v425 = vadd.f32 %v330, %v424
        %v426 = vpop.f32.mrb[0].mxu0
        %v427 = vadd.f32 %v326, %v426
        %v428 = vpop.f32.mrb[0].mxu0
        %v429 = vadd.f32 %v330, %v428
        %430 = vmatprep.mubr.bf16.mxu0 0
        %431 = vmatmul.mubr.bf16.gmra.mrb[0].mxu0 %v361
        %v432 = vpop.f32.mrb[0].mxu0
        %v433 = vadd.f32 %v326, %v432
        %v434 = vpop.f32.mrb[0].mxu0
        %v435 = vadd.f32 %v330, %v434
        %v436 = vpop.f32.mrb[0].mxu0
        %v437 = vadd.f32 %v326, %v436
        %v438 = vpop.f32.mrb[0].mxu0
        %v439 = vadd.f32 %v330, %v438
        %440 = vmatprep.mubr.bf16.mxu0 0
        %441 = vmatmul.mubr.bf16.gmra.mrb[0].mxu0 %v364
        %v442 = vpop.f32.mrb[0].mxu0
        %v443 = vadd.f32 %v326, %v442
        %v444 = vpop.f32.mrb[0].mxu0
        %v445 = vadd.f32 %v330, %v444
        %v446 = vpop.f32.mrb[0].mxu0
        %v447 = vadd.f32 %v326, %v446
        %v448 = vpop.f32.mrb[0].mxu0
        %v449 = vadd.f32 %v330, %v448
        %450 = vmatprep.mubr.bf16.mxu0 0
        %451 = vmatmul.mubr.bf16.gmra.mrb[0].mxu0 %v367
        %v452 = vpop.f32.mrb[0].mxu0
        %v453 = vadd.f32 %v326, %v452
        %v454 = vpop.f32.mrb[0].mxu0
        %v455 = vadd.f32 %v330, %v454
        %v456 = vpop.f32.mrb[0].mxu0
        %v457 = vadd.f32 %v326, %v456
        %v458 = vpop.f32.mrb[0].mxu0
        %v459 = vadd.f32 %v330, %v458
        %460 = vmatprep.mubr.bf16.mxu0 0
        %461 = vmatmul.mubr.bf16.gmra.mrb[0].mxu0 %v370
        %v462 = vpop.f32.mrb[0].mxu0
        %v463 = vadd.f32 %v326, %v462
        %v464 = vpop.f32.mrb[0].mxu0
        %v465 = vadd.f32 %v330, %v464
        %v466 = vpop.f32.mrb[0].mxu0
        %v467 = vadd.f32 %v326, %v466
        %v468 = vpop.f32.mrb[0].mxu0
        %v469 = vadd.f32 %v330, %v468
        %470 = vmatprep.mubr.bf16.mxu0 0
        %471 = vmatmul.mubr.bf16.gmra.mrb[0].mxu0 %v373
        %v472 = vpop.f32.mrb[0].mxu0
        %v473 = vadd.f32 %v326, %v472
        %v474 = vpop.f32.mrb[0].mxu0
        %v475 = vadd.f32 %v330, %v474
        %v476 = vpop.f32.mrb[0].mxu0
        %v477 = vadd.f32 %v326, %v476
        %v478 = vpop.f32.mrb[0].mxu0
        %v479 = vadd.f32 %v330, %v478
        %480 = vmatprep.mubr.bf16.mxu0 0
        %481 = vmatmul.mubr.bf16.gmra.mrb[0].mxu0 %v376
        %v482 = vpop.f32.mrb[0].mxu0
        %v483 = vadd.f32 %v326, %v482
        %v484 = vpop.f32.mrb[0].mxu0
        %v485 = vadd.f32 %v330, %v484
        %v486 = vpop.f32.mrb[0].mxu0
        %v487 = vadd.f32 %v326, %v486
        %v488 = vpop.f32.mrb[0].mxu0
        %v489 = vadd.f32 %v330, %v488
        %490 = vdwg.mxu0
        %vm491 = vcmp.gt.f32.partialorder %v413, 0.0
        %vm492 = vcmp.gt.f32.partialorder %v415, 0.0
        %vm493 = vcmp.gt.f32.partialorder %v417, 0.0
        %vm494 = vcmp.gt.f32.partialorder %v419, 0.0
        %vm495 = vcmp.gt.f32.partialorder %v423, 0.0
        %vm496 = vcmp.gt.f32.partialorder %v425, 0.0
        %vm497 = vcmp.gt.f32.partialorder %v427, 0.0
        %vm498 = vcmp.gt.f32.partialorder %v429, 0.0
        %vm499 = vcmp.gt.f32.partialorder %v433, 0.0
        %vm500 = vcmp.gt.f32.partialorder %v435, 0.0
        %vm501 = vcmp.gt.f32.partialorder %v437, 0.0
        %vm502 = vcmp.gt.f32.partialorder %v439, 0.0
        %vm503 = vcmp.gt.f32.partialorder %v443, 0.0
        %vm504 = vcmp.gt.f32.partialorder %v445, 0.0
        %vm505 = vcmp.gt.f32.partialorder %v447, 0.0
        %vm506 = vcmp.gt.f32.partialorder %v449, 0.0
        %vm507 = vcmp.gt.f32.partialorder %v453, 0.0
        %vm508 = vcmp.gt.f32.partialorder %v455, 0.0
        %vm509 = vcmp.gt.f32.partialorder %v457, 0.0
        %vm510 = vcmp.gt.f32.partialorder %v459, 0.0
        %vm511 = vcmp.gt.f32.partialorder %v463, 0.0
        %vm512 = vcmp.gt.f32.partialorder %v465, 0.0
        %vm513 = vcmp.gt.f32.partialorder %v467, 0.0
        %vm514 = vcmp.gt.f32.partialorder %v469, 0.0
        %vm515 = vcmp.gt.f32.partialorder %v473, 0.0
        %vm516 = vcmp.gt.f32.partialorder %v475, 0.0
        %vm517 = vcmp.gt.f32.partialorder %v477, 0.0
        %vm518 = vcmp.gt.f32.partialorder %v479, 0.0
        %vm519 = vcmp.gt.f32.partialorder %v483, 0.0
        %vm520 = vcmp.gt.f32.partialorder %v485, 0.0
        %vm521 = vcmp.gt.f32.partialorder %v487, 0.0
        %vm522 = vcmp.gt.f32.partialorder %v489, 0.0
        %v523 = vmul.f32 %v413, 0.2
        %v524 = vmul.f32 %v415, 0.2
        %v525 = vmul.f32 %v417, 0.2
        %v526 = vmul.f32 %v419, 0.2
        %v527 = vmul.f32 %v423, 0.2
        %v528 = vmul.f32 %v425, 0.2
        %v529 = vmul.f32 %v427, 0.2
        %v530 = vmul.f32 %v429, 0.2
        %v531 = vmul.f32 %v433, 0.2
        %v532 = vmul.f32 %v435, 0.2
        %v533 = vmul.f32 %v437, 0.2
        %v534 = vmul.f32 %v439, 0.2
        %v535 = vmul.f32 %v443, 0.2
        %v536 = vmul.f32 %v445, 0.2
        %v537 = vmul.f32 %v447, 0.2
        %v538 = vmul.f32 %v449, 0.2
        %v539 = vmul.f32 %v453, 0.2
        %v540 = vmul.f32 %v455, 0.2
        %v541 = vmul.f32 %v457, 0.2
        %v542 = vmul.f32 %v459, 0.2
        %v543 = vmul.f32 %v463, 0.2
        %v544 = vmul.f32 %v465, 0.2
        %v545 = vmul.f32 %v467, 0.2
        %v546 = vmul.f32 %v469, 0.2
        %v547 = vmul.f32 %v473, 0.2
        %v548 = vmul.f32 %v475, 0.2
        %v549 = vmul.f32 %v477, 0.2
        %v550 = vmul.f32 %v479, 0.2
        %v551 = vmul.f32 %v483, 0.2
        %v552 = vmul.f32 %v485, 0.2
        %v553 = vmul.f32 %v487, 0.2
        %v554 = vmul.f32 %v489, 0.2
        %v555 = vsel %vm491, %v413, %v523
        %v556 = vsel %vm492, %v415, %v524
        %v557 = vsel %vm493, %v417, %v525
        %v558 = vsel %vm494, %v419, %v526
        %v559 = vsel %vm495, %v423, %v527
        %v560 = vsel %vm496, %v425, %v528
        %v561 = vsel %vm497, %v427, %v529
        %v562 = vsel %vm498, %v429, %v530
        %v563 = vsel %vm499, %v433, %v531
        %v564 = vsel %vm500, %v435, %v532
        %v565 = vsel %vm501, %v437, %v533
        %v566 = vsel %vm502, %v439, %v534
        %v567 = vsel %vm503, %v443, %v535
        %v568 = vsel %vm504, %v445, %v536
        %v569 = vsel %vm505, %v447, %v537
        %v570 = vsel %vm506, %v449, %v538
        %v571 = vsel %vm507, %v453, %v539
        %v572 = vsel %vm508, %v455, %v540
        %v573 = vsel %vm509, %v457, %v541
        %v574 = vsel %vm510, %v459, %v542
        %v575 = vsel %vm511, %v463, %v543
        %v576 = vsel %vm512, %v465, %v544
        %v577 = vsel %vm513, %v467, %v545
        %v578 = vsel %vm514, %v469, %v546
        %v579 = vsel %vm515, %v473, %v547
        %v580 = vsel %vm516, %v475, %v548
        %v581 = vsel %vm517, %v477, %v549
        %v582 = vsel %vm518, %v479, %v550
        %v583 = vsel %vm519, %v483, %v551
        %v584 = vsel %vm520, %v485, %v552
        %v585 = vsel %vm521, %v487, %v553
        %v586 = vsel %vm522, %v489, %v554
        %v587 = vpack.c.bf16 %v557, %v555
        %v588 = vpack.c.bf16 %v558, %v556
        %v589 = vpack.c.bf16 %v561, %v559
        %v590 = vpack.c.bf16 %v562, %v560
        %v591 = vpack.c.bf16 %v565, %v563
        %v592 = vpack.c.bf16 %v566, %v564
        %v593 = vpack.c.bf16 %v569, %v567
        %v594 = vpack.c.bf16 %v570, %v568
        %v595 = vpack.c.bf16 %v573, %v571
        %v596 = vpack.c.bf16 %v574, %v572
        %v597 = vpack.c.bf16 %v577, %v575
        %v598 = vpack.c.bf16 %v578, %v576
        %v599 = vpack.c.bf16 %v581, %v579
        %v600 = vpack.c.bf16 %v582, %v580
        %v601 = vpack.c.bf16 %v585, %v583
        %v602 = vpack.c.bf16 %v586, %v584
        %v603 = vld [vmem:[#allocation2] sm:$0xf]
        %v604 = vld [vmem:[#allocation2 + $0x4] sm:$0xf]
        %v605 = vld [vmem:[#allocation2 + $0x8] sm:$0xf]
        %v606 = vld [vmem:[#allocation2 + $0xc] sm:$0xf]
        %v607 = vld [vmem:[#allocation2 + $0x10] sm:$0xf]
        %v608 = vld [vmem:[#allocation2 + $0x14] sm:$0xf]
        %v609 = vld [vmem:[#allocation2 + $0x18] sm:$0xf]
        %v610 = vld [vmem:[#allocation2 + $0x1c] sm:$0xf]
        %v611 = vld [vmem:[#allocation2 + $0x20] sm:$0xf]
        %v612 = vld [vmem:[#allocation2 + $0x24] sm:$0xf]
        %v613 = vld [vmem:[#allocation2 + $0x28] sm:$0xf]
        %v614 = vld [vmem:[#allocation2 + $0x2c] sm:$0xf]
        %v615 = vld [vmem:[#allocation2 + $0x30] sm:$0xf]
        %v616 = vld [vmem:[#allocation2 + $0x34] sm:$0xf]
        %v617 = vld [vmem:[#allocation2 + $0x38] sm:$0xf]
        %v618 = vld [vmem:[#allocation2 + $0x3c] sm:$0xf]
        %v619 = vld [vmem:[#allocation2 + $0x40] sm:$0xf]
        %v620 = vld [vmem:[#allocation2 + $0x44] sm:$0xf]
        %v621 = vld [vmem:[#allocation2 + $0x48] sm:$0xf]
        %v622 = vld [vmem:[#allocation2 + $0x4c] sm:$0xf]
        %v623 = vld [vmem:[#allocation2 + $0x50] sm:$0xf]
        %v624 = vld [vmem:[#allocation2 + $0x54] sm:$0xf]
        %v625 = vld [vmem:[#allocation2 + $0x58] sm:$0xf]
        %v626 = vld [vmem:[#allocation2 + $0x5c] sm:$0xf]
        %v627 = vld [vmem:[#allocation2 + $0x60] sm:$0xf]
        %v628 = vld [vmem:[#allocation2 + $0x64] sm:$0xf]
        %v629 = vld [vmem:[#allocation2 + $0x68] sm:$0xf]
        %v630 = vld [vmem:[#allocation2 + $0x6c] sm:$0xf]
        %v631 = vld [vmem:[%s5] sm:$0x1]
        %v633 = vlaneseq
        %v634 = vshrl.u32 %v633, 7
        %v635 = vsub.s32 0, %v634
        %v636 = vrot.slane %v631, %v635
        %v666 = vunpack.c.l.b16 %v603
        %v667 = vunpack.c.l.b16 %v604
        %v668 = vunpack.c.l.b16 %v605
        %v669 = vunpack.c.l.b16 %v606
        %v670 = vunpack.c.l.b16 %v607
        %v671 = vunpack.c.l.b16 %v608
        %v672 = vunpack.c.l.b16 %v609
        %v673 = vunpack.c.l.b16 %v610
        %v674 = vunpack.c.l.b16 %v611
        %v675 = vunpack.c.l.b16 %v612
        %v676 = vunpack.c.l.b16 %v613
        %v677 = vunpack.c.l.b16 %v614
        %v678 = vunpack.c.l.b16 %v615
        %v679 = vunpack.c.l.b16 %v616
        %v680 = vunpack.c.l.b16 %v617
        %v681 = vunpack.c.l.b16 %v618
        %v682 = vunpack.c.l.b16 %v619
        %v683 = vunpack.c.l.b16 %v620
        %v684 = vunpack.c.l.b16 %v621
        %v685 = vunpack.c.l.b16 %v622
        %v686 = vunpack.c.l.b16 %v623
        %v687 = vunpack.c.l.b16 %v624
        %v688 = vunpack.c.l.b16 %v625
        %v689 = vunpack.c.l.b16 %v626
        %v690 = vunpack.c.l.b16 %v627
        %v691 = vunpack.c.l.b16 %v628
        %v692 = vunpack.c.l.b16 %v629
        %v693 = vunpack.c.l.b16 %v630
        %v694 = vpack.c.b16 %v667, %v666
        %v695 = vpack.c.b16 %v669, %v668
        %v696 = vpack.c.b16 %v671, %v670
        %v697 = vpack.c.b16 %v673, %v672
        %v698 = vpack.c.b16 %v675, %v674
        %v699 = vpack.c.b16 %v677, %v676
        %v700 = vpack.c.b16 %v679, %v678
        %v701 = vpack.c.b16 %v681, %v680
        %v702 = vpack.c.b16 %v683, %v682
        %v703 = vpack.c.b16 %v685, %v684
        %v704 = vpack.c.b16 %v687, %v686
        %v705 = vpack.c.b16 %v689, %v688
        %v706 = vpack.c.b16 %v691, %v690
        %v707 = vpack.c.b16 %v693, %v692
        %vm722 = vcmask 785408
        %v724 = vsel %vm722, %v588, 0
        %v727 = vsel %vm722, %v590, 0
        %v730 = vsel %vm722, %v592, 0
        %v733 = vsel %vm722, %v594, 0
        %v736 = vsel %vm722, %v596, 0
        %v739 = vsel %vm722, %v598, 0
        %v742 = vsel %vm722, %v600, 0
        %v745 = vsel %vm722, %v602, 0
        %747 = vmatprep.subr.bf16.mxu0 0
        %748 = vmatpush1.bf16.msra.mxu0 %v694
        %749 = vmatprep.subr.bf16.mxu0 0
        %750 = vmatpush1.bf16.msra.mxu0 %v695
        %751 = vmatprep.subr.bf16.mxu0 0
        %752 = vmatpush1.bf16.msra.mxu0 %v696
        %753 = vmatprep.subr.bf16.mxu0 0
        %754 = vmatpush1.bf16.msra.mxu0 %v697
        %755 = vmatprep.subr.bf16.mxu0 0
        %756 = vmatpush1.bf16.msra.mxu0 %v698
        %757 = vmatprep.subr.bf16.mxu0 0
        %758 = vmatpush1.bf16.msra.mxu0 %v699
        %759 = vmatprep.subr.bf16.mxu0 0
        %760 = vmatpush1.bf16.msra.mxu0 %v700
        %761 = vmatprep.subr.bf16.mxu0 0
        %762 = vmatpush1.bf16.msra.mxu0 %v701
        %763 = vmatprep.subr.bf16.mxu0 0
        %764 = vmatpush1.bf16.msra.mxu0 %v702
        %765 = vmatprep.subr.bf16.mxu0 0
        %766 = vmatpush1.bf16.msra.mxu0 %v703
        %767 = vmatprep.subr.bf16.mxu0 0
        %768 = vmatpush1.bf16.msra.mxu0 %v704
        %769 = vmatprep.subr.bf16.mxu0 0
        %770 = vmatpush1.bf16.msra.mxu0 %v705
        %771 = vmatprep.subr.bf16.mxu0 0
        %772 = vmatpush1.bf16.msra.mxu0 %v706
        %773 = vmatprep.subr.bf16.mxu0 0
        %774 = vmatpush1.bf16.msra.mxu0 %v707
        %775 = vmatprep.subr.bf16.mxu0 0
        %776 = vmatpush1.bf16.msra.mxu0 0
        %777 = vmatprep.subr.bf16.mxu0 0
        %778 = vmatpush1.bf16.msra.mxu0 0
        %779 = vmatprep.mubr.bf16.mxu0 %v724
        %780 = vmatmul.mubr.bf16.gmra.mrb[0].mxu0 %v587
        %v781 = vpop.f32.mrb[0].mxu0
        %v782 = vadd.f32 %v636, %v781
        %v783 = vpop.f32.mrb[0].mxu0
        %v784 = vpop.f32.mrb[0].mxu0
        %v785 = vadd.f32 %v636, %v784
        %v786 = vpop.f32.mrb[0].mxu0
        %787 = vmatprep.mubr.bf16.mxu0 %v727
        %788 = vmatmul.mubr.bf16.gmra.mrb[0].mxu0 %v589
        %v789 = vpop.f32.mrb[0].mxu0
        %v790 = vadd.f32 %v636, %v789
        %v791 = vpop.f32.mrb[0].mxu0
        %v792 = vpop.f32.mrb[0].mxu0
        %v793 = vadd.f32 %v636, %v792
        %v794 = vpop.f32.mrb[0].mxu0
        %795 = vmatprep.mubr.bf16.mxu0 %v730
        %796 = vmatmul.mubr.bf16.gmra.mrb[0].mxu0 %v591
        %v797 = vpop.f32.mrb[0].mxu0
        %v798 = vadd.f32 %v636, %v797
        %v799 = vpop.f32.mrb[0].mxu0
        %v800 = vpop.f32.mrb[0].mxu0
        %v801 = vadd.f32 %v636, %v800
        %v802 = vpop.f32.mrb[0].mxu0
        %803 = vmatprep.mubr.bf16.mxu0 %v733
        %804 = vmatmul.mubr.bf16.gmra.mrb[0].mxu0 %v593
        %v805 = vpop.f32.mrb[0].mxu0
        %v806 = vadd.f32 %v636, %v805
        %v807 = vpop.f32.mrb[0].mxu0
        %v808 = vpop.f32.mrb[0].mxu0
        %v809 = vadd.f32 %v636, %v808
        %v810 = vpop.f32.mrb[0].mxu0
        %811 = vmatprep.mubr.bf16.mxu0 %v736
        %812 = vmatmul.mubr.bf16.gmra.mrb[0].mxu0 %v595
        %v813 = vpop.f32.mrb[0].mxu0
        %v814 = vadd.f32 %v636, %v813
        %v815 = vpop.f32.mrb[0].mxu0
        %v816 = vpop.f32.mrb[0].mxu0
        %v817 = vadd.f32 %v636, %v816
        %v818 = vpop.f32.mrb[0].mxu0
        %819 = vmatprep.mubr.bf16.mxu0 %v739
        %820 = vmatmul.mubr.bf16.gmra.mrb[0].mxu0 %v597
        %v821 = vpop.f32.mrb[0].mxu0
        %v822 = vadd.f32 %v636, %v821
        %v823 = vpop.f32.mrb[0].mxu0
        %v824 = vpop.f32.mrb[0].mxu0
        %v825 = vadd.f32 %v636, %v824
        %v826 = vpop.f32.mrb[0].mxu0
        %827 = vmatprep.mubr.bf16.mxu0 %v742
        %828 = vmatmul.mubr.bf16.gmra.mrb[0].mxu0 %v599
        %v829 = vpop.f32.mrb[0].mxu0
        %v830 = vadd.f32 %v636, %v829
        %v831 = vpop.f32.mrb[0].mxu0
        %v832 = vpop.f32.mrb[0].mxu0
        %v833 = vadd.f32 %v636, %v832
        %v834 = vpop.f32.mrb[0].mxu0
        %835 = vmatprep.mubr.bf16.mxu0 %v745
        %836 = vmatmul.mubr.bf16.gmra.mrb[0].mxu0 %v601
        %v837 = vpop.f32.mrb[0].mxu0
        %v838 = vadd.f32 %v636, %v837
        %v839 = vpop.f32.mrb[0].mxu0
        %v840 = vpop.f32.mrb[0].mxu0
        %v841 = vadd.f32 %v636, %v840
        %v842 = vpop.f32.mrb[0].mxu0
        %843 = vdwg.mxu0
        %v844 = vlaneseq
        %v845 = vand.u32 %v844, 127
        %vm846 = vcmp.lt.s32.totalorder %v845, 4
        %vm847 = vcmp.ge.s32.totalorder %v845, 4
        %vm848 = vcmp.lt.s32.totalorder %v845, 7
        %vm849 = vmand %vm847, %vm848
        %vm850 = vcmp.ge.s32.totalorder %v845, 7
        %vm851 = vcmp.lt.s32.totalorder %v845, 10
        %vm852 = vmand %vm850, %vm851
        %vm853 = vcmp.ge.s32.totalorder %v845, 10
        %vm854 = vcmp.lt.s32.totalorder %v845, 14
        %vm855 = vmand %vm853, %vm854
        %vm856 = vcmp.ge.s32.totalorder %v845, 14
        %vm857 = vcmp.lt.s32.totalorder %v845, 17
        %vm858 = vmand %vm856, %vm857
        %vm859 = vcmp.eq.s32.totalorder %v845, 17
        %vm860 = vcmp.eq.s32.totalorder %v845, 18
        %v861 = vld [vmem:[%s284] sm:$0xff]
        %v862 = vld [vmem:[%s284 + $0x8] sm:$0xff]
        %v863 = vld [vmem:[%s284 + $0x10] sm:$0xff]
        %v864 = vld [vmem:[%s284 + $0x18] sm:$0xff]
        %v865 = vld [vmem:[%s284 + $0x20] sm:$0xff]
        %v866 = vld [vmem:[%s284 + $0x28] sm:$0xff]
        %v867 = vld [vmem:[%s284 + $0x30] sm:$0xff]
        %v868 = vld [vmem:[%s284 + $0x38] sm:$0xff]
        %v869 = vld [vmem:[%s284 + $0x40] sm:$0xff]
        %v870 = vld [vmem:[%s284 + $0x48] sm:$0xff]
        %v871 = vld [vmem:[%s284 + $0x50] sm:$0xff]
        %v872 = vld [vmem:[%s284 + $0x58] sm:$0xff]
        %v873 = vld [vmem:[%s284 + $0x60] sm:$0xff]
        %v874 = vld [vmem:[%s284 + $0x68] sm:$0xff]
        %v875 = vld [vmem:[%s284 + $0x70] sm:$0xff]
        %v876 = vld [vmem:[%s284 + $0x78] sm:$0xff]
        %v877 = vadd.f32 %v782, %v861
        %v878 = vadd.f32 %v785, %v862
        %v879 = vadd.f32 %v790, %v863
        %v880 = vadd.f32 %v793, %v864
        %v881 = vadd.f32 %v798, %v865
        %v882 = vadd.f32 %v801, %v866
        %v883 = vadd.f32 %v806, %v867
        %v884 = vadd.f32 %v809, %v868
        %v885 = vadd.f32 %v814, %v869
        %v886 = vadd.f32 %v817, %v870
        %v887 = vadd.f32 %v822, %v871
        %v888 = vadd.f32 %v825, %v872
        %v889 = vadd.f32 %v830, %v873
        %v890 = vadd.f32 %v833, %v874
        %v891 = vadd.f32 %v838, %v875
        %v892 = vadd.f32 %v841, %v876
        %v893 = vsel %vm846, %v877, -inf
        %v894 = vsel %vm846, %v878, -inf
        %v895 = vsel %vm846, %v879, -inf
        %v896 = vsel %vm846, %v880, -inf
        %v897 = vsel %vm846, %v881, -inf
        %v898 = vsel %vm846, %v882, -inf
        %v899 = vsel %vm846, %v883, -inf
        %v900 = vsel %vm846, %v884, -inf
        %v901 = vsel %vm846, %v885, -inf
        %v902 = vsel %vm846, %v886, -inf
        %v903 = vsel %vm846, %v887, -inf
        %v904 = vsel %vm846, %v888, -inf
        %v905 = vsel %vm846, %v889, -inf
        %v906 = vsel %vm846, %v890, -inf
        %v907 = vsel %vm846, %v891, -inf
        %v908 = vsel %vm846, %v892, -inf
        %909 = vmax.xlane.f32.xlu0 %v893
        %v910 = vpop.xlane.xlu0 %909
        %911 = vmax.xlane.f32.xlu0 %v894
        %v912 = vpop.xlane.xlu0 %911
        %913 = vmax.xlane.f32.xlu0 %v895
        %v914 = vpop.xlane.xlu0 %913
        %915 = vmax.xlane.f32.xlu0 %v896
        %v916 = vpop.xlane.xlu0 %915
        %917 = vmax.xlane.f32.xlu0 %v897
        %v918 = vpop.xlane.xlu0 %917
        %919 = vmax.xlane.f32.xlu0 %v898
        %v920 = vpop.xlane.xlu0 %919
        %921 = vmax.xlane.f32.xlu0 %v899
        %v922 = vpop.xlane.xlu0 %921
        %923 = vmax.xlane.f32.xlu0 %v900
        %v924 = vpop.xlane.xlu0 %923
        %925 = vmax.xlane.f32.xlu0 %v901
        %v926 = vpop.xlane.xlu0 %925
        %927 = vmax.xlane.f32.xlu0 %v902
        %v928 = vpop.xlane.xlu0 %927
        %929 = vmax.xlane.f32.xlu0 %v903
        %v930 = vpop.xlane.xlu0 %929
        %931 = vmax.xlane.f32.xlu0 %v904
        %v932 = vpop.xlane.xlu0 %931
        %933 = vmax.xlane.f32.xlu0 %v905
        %v934 = vpop.xlane.xlu0 %933
        %935 = vmax.xlane.f32.xlu0 %v906
        %v936 = vpop.xlane.xlu0 %935
        %937 = vmax.xlane.f32.xlu0 %v907
        %v938 = vpop.xlane.xlu0 %937
        %939 = vmax.xlane.f32.xlu0 %v908
        %v940 = vpop.xlane.xlu0 %939
        %vm941 = vcmp.ge.f32.partialorder %v893, %v910
        %vm942 = vcmp.ge.f32.partialorder %v894, %v912
        %vm943 = vcmp.ge.f32.partialorder %v895, %v914
        %vm944 = vcmp.ge.f32.partialorder %v896, %v916
        %vm945 = vcmp.ge.f32.partialorder %v897, %v918
        %vm946 = vcmp.ge.f32.partialorder %v898, %v920
        %vm947 = vcmp.ge.f32.partialorder %v899, %v922
        %vm948 = vcmp.ge.f32.partialorder %v900, %v924
        %vm949 = vcmp.ge.f32.partialorder %v901, %v926
        %vm950 = vcmp.ge.f32.partialorder %v902, %v928
        %vm951 = vcmp.ge.f32.partialorder %v903, %v930
        %vm952 = vcmp.ge.f32.partialorder %v904, %v932
        %vm953 = vcmp.ge.f32.partialorder %v905, %v934
        %vm954 = vcmp.ge.f32.partialorder %v906, %v936
        %vm955 = vcmp.ge.f32.partialorder %v907, %v938
        %vm956 = vcmp.ge.f32.partialorder %v908, %v940
        %vm957 = vmand %vm846, %vm941
        %vm958 = vmand %vm846, %vm942
        %vm959 = vmand %vm846, %vm943
        %vm960 = vmand %vm846, %vm944
        %vm961 = vmand %vm846, %vm945
        %vm962 = vmand %vm846, %vm946
        %vm963 = vmand %vm846, %vm947
        %vm964 = vmand %vm846, %vm948
        %vm965 = vmand %vm846, %vm949
        %vm966 = vmand %vm846, %vm950
        %vm967 = vmand %vm846, %vm951
        %vm968 = vmand %vm846, %vm952
        %vm969 = vmand %vm846, %vm953
        %vm970 = vmand %vm846, %vm954
        %vm971 = vmand %vm846, %vm955
        %vm972 = vmand %vm846, %vm956
        %v973 = vsel %vm957, %v845, 128
        %v974 = vsel %vm958, %v845, 128
        %v975 = vsel %vm959, %v845, 128
        %v976 = vsel %vm960, %v845, 128
        %v977 = vsel %vm961, %v845, 128
        %v978 = vsel %vm962, %v845, 128
        %v979 = vsel %vm963, %v845, 128
        %v980 = vsel %vm964, %v845, 128
        %v981 = vsel %vm965, %v845, 128
        %v982 = vsel %vm966, %v845, 128
        %v983 = vsel %vm967, %v845, 128
        %v984 = vsel %vm968, %v845, 128
        %v985 = vsel %vm969, %v845, 128
        %v986 = vsel %vm970, %v845, 128
        %v987 = vsel %vm971, %v845, 128
        %v988 = vsel %vm972, %v845, 128
        %v989 = vand.u32 %v973, 65535
        %v990 = vshra.s32 %v973, 16
        %v991 = vcvt.s32.f32 %v989
        %v992 = vcvt.s32.f32 %v990
        %993 = vmin.xlane.f32.xlu0 %v992
        %v994 = vpop.xlane.xlu0 %993
        %vm995 = vcmp.eq.f32.partialorder %v992, %v994
        %v996 = vsel %vm995, %v991, inf
        %997 = vmin.xlane.f32.xlu0 %v996
        %v998 = vpop.xlane.xlu0 %997
        %v999 = vcvt.f32.s32 %v998
        %v1000 = vcvt.f32.s32 %v994
        %v1001 = vshll.u32 %v1000, 16
        %v1002 = vadd.s32 %v1001, %v999
        %v1003 = vand.u32 %v974, 65535
        %v1004 = vshra.s32 %v974, 16
        %v1005 = vcvt.s32.f32 %v1003
        %v1006 = vcvt.s32.f32 %v1004
        %1007 = vmin.xlane.f32.xlu0 %v1006
        %v1008 = vpop.xlane.xlu0 %1007
        %vm1009 = vcmp.eq.f32.partialorder %v1006, %v1008
        %v1010 = vsel %vm1009, %v1005, inf
        %1011 = vmin.xlane.f32.xlu0 %v1010
        %v1012 = vpop.xlane.xlu0 %1011
        %v1013 = vcvt.f32.s32 %v1012
        %v1014 = vcvt.f32.s32 %v1008
        %v1015 = vshll.u32 %v1014, 16
        %v1016 = vadd.s32 %v1015, %v1013
        %v1017 = vand.u32 %v975, 65535
        %v1018 = vshra.s32 %v975, 16
        %v1019 = vcvt.s32.f32 %v1017
        %v1020 = vcvt.s32.f32 %v1018
        %1021 = vmin.xlane.f32.xlu0 %v1020
        %v1022 = vpop.xlane.xlu0 %1021
        %vm1023 = vcmp.eq.f32.partialorder %v1020, %v1022
        %v1024 = vsel %vm1023, %v1019, inf
        %1025 = vmin.xlane.f32.xlu0 %v1024
        %v1026 = vpop.xlane.xlu0 %1025
        %v1027 = vcvt.f32.s32 %v1026
        %v1028 = vcvt.f32.s32 %v1022
        %v1029 = vshll.u32 %v1028, 16
        %v1030 = vadd.s32 %v1029, %v1027
        %v1031 = vand.u32 %v976, 65535
        %v1032 = vshra.s32 %v976, 16
        %v1033 = vcvt.s32.f32 %v1031
        %v1034 = vcvt.s32.f32 %v1032
        %1035 = vmin.xlane.f32.xlu0 %v1034
        %v1036 = vpop.xlane.xlu0 %1035
        %vm1037 = vcmp.eq.f32.partialorder %v1034, %v1036
        %v1038 = vsel %vm1037, %v1033, inf
        %1039 = vmin.xlane.f32.xlu0 %v1038
        %v1040 = vpop.xlane.xlu0 %1039
        %v1041 = vcvt.f32.s32 %v1040
        %v1042 = vcvt.f32.s32 %v1036
        %v1043 = vshll.u32 %v1042, 16
        %v1044 = vadd.s32 %v1043, %v1041
        %v1045 = vand.u32 %v977, 65535
        %v1046 = vshra.s32 %v977, 16
        %v1047 = vcvt.s32.f32 %v1045
        %v1048 = vcvt.s32.f32 %v1046
        %1049 = vmin.xlane.f32.xlu0 %v1048
        %v1050 = vpop.xlane.xlu0 %1049
        %vm1051 = vcmp.eq.f32.partialorder %v1048, %v1050
        %v1052 = vsel %vm1051, %v1047, inf
        %1053 = vmin.xlane.f32.xlu0 %v1052
        %v1054 = vpop.xlane.xlu0 %1053
        %v1055 = vcvt.f32.s32 %v1054
        %v1056 = vcvt.f32.s32 %v1050
        %v1057 = vshll.u32 %v1056, 16
        %v1058 = vadd.s32 %v1057, %v1055
        %v1059 = vand.u32 %v978, 65535
        %v1060 = vshra.s32 %v978, 16
        %v1061 = vcvt.s32.f32 %v1059
        %v1062 = vcvt.s32.f32 %v1060
        %1063 = vmin.xlane.f32.xlu0 %v1062
        %v1064 = vpop.xlane.xlu0 %1063
        %vm1065 = vcmp.eq.f32.partialorder %v1062, %v1064
        %v1066 = vsel %vm1065, %v1061, inf
        %1067 = vmin.xlane.f32.xlu0 %v1066
        %v1068 = vpop.xlane.xlu0 %1067
        %v1069 = vcvt.f32.s32 %v1068
        %v1070 = vcvt.f32.s32 %v1064
        %v1071 = vshll.u32 %v1070, 16
        %v1072 = vadd.s32 %v1071, %v1069
        %v1073 = vand.u32 %v979, 65535
        %v1074 = vshra.s32 %v979, 16
        %v1075 = vcvt.s32.f32 %v1073
        %v1076 = vcvt.s32.f32 %v1074
        %1077 = vmin.xlane.f32.xlu0 %v1076
        %v1078 = vpop.xlane.xlu0 %1077
        %vm1079 = vcmp.eq.f32.partialorder %v1076, %v1078
        %v1080 = vsel %vm1079, %v1075, inf
        %1081 = vmin.xlane.f32.xlu0 %v1080
        %v1082 = vpop.xlane.xlu0 %1081
        %v1083 = vcvt.f32.s32 %v1082
        %v1084 = vcvt.f32.s32 %v1078
        %v1085 = vshll.u32 %v1084, 16
        %v1086 = vadd.s32 %v1085, %v1083
        %v1087 = vand.u32 %v980, 65535
        %v1088 = vshra.s32 %v980, 16
        %v1089 = vcvt.s32.f32 %v1087
        %v1090 = vcvt.s32.f32 %v1088
        %1091 = vmin.xlane.f32.xlu0 %v1090
        %v1092 = vpop.xlane.xlu0 %1091
        %vm1093 = vcmp.eq.f32.partialorder %v1090, %v1092
        %v1094 = vsel %vm1093, %v1089, inf
        %1095 = vmin.xlane.f32.xlu0 %v1094
        %v1096 = vpop.xlane.xlu0 %1095
        %v1097 = vcvt.f32.s32 %v1096
        %v1098 = vcvt.f32.s32 %v1092
        %v1099 = vshll.u32 %v1098, 16
        %v1100 = vadd.s32 %v1099, %v1097
        %v1101 = vand.u32 %v981, 65535
        %v1102 = vshra.s32 %v981, 16
        %v1103 = vcvt.s32.f32 %v1101
        %v1104 = vcvt.s32.f32 %v1102
        %1105 = vmin.xlane.f32.xlu0 %v1104
        %v1106 = vpop.xlane.xlu0 %1105
        %vm1107 = vcmp.eq.f32.partialorder %v1104, %v1106
        %v1108 = vsel %vm1107, %v1103, inf
        %1109 = vmin.xlane.f32.xlu0 %v1108
        %v1110 = vpop.xlane.xlu0 %1109
        %v1111 = vcvt.f32.s32 %v1110
        %v1112 = vcvt.f32.s32 %v1106
        %v1113 = vshll.u32 %v1112, 16
        %v1114 = vadd.s32 %v1113, %v1111
        %v1115 = vand.u32 %v982, 65535
        %v1116 = vshra.s32 %v982, 16
        %v1117 = vcvt.s32.f32 %v1115
        %v1118 = vcvt.s32.f32 %v1116
        %1119 = vmin.xlane.f32.xlu0 %v1118
        %v1120 = vpop.xlane.xlu0 %1119
        %vm1121 = vcmp.eq.f32.partialorder %v1118, %v1120
        %v1122 = vsel %vm1121, %v1117, inf
        %1123 = vmin.xlane.f32.xlu0 %v1122
        %v1124 = vpop.xlane.xlu0 %1123
        %v1125 = vcvt.f32.s32 %v1124
        %v1126 = vcvt.f32.s32 %v1120
        %v1127 = vshll.u32 %v1126, 16
        %v1128 = vadd.s32 %v1127, %v1125
        %v1129 = vand.u32 %v983, 65535
        %v1130 = vshra.s32 %v983, 16
        %v1131 = vcvt.s32.f32 %v1129
        %v1132 = vcvt.s32.f32 %v1130
        %1133 = vmin.xlane.f32.xlu0 %v1132
        %v1134 = vpop.xlane.xlu0 %1133
        %vm1135 = vcmp.eq.f32.partialorder %v1132, %v1134
        %v1136 = vsel %vm1135, %v1131, inf
        %1137 = vmin.xlane.f32.xlu0 %v1136
        %v1138 = vpop.xlane.xlu0 %1137
        %v1139 = vcvt.f32.s32 %v1138
        %v1140 = vcvt.f32.s32 %v1134
        %v1141 = vshll.u32 %v1140, 16
        %v1142 = vadd.s32 %v1141, %v1139
        %v1143 = vand.u32 %v984, 65535
        %v1144 = vshra.s32 %v984, 16
        %v1145 = vcvt.s32.f32 %v1143
        %v1146 = vcvt.s32.f32 %v1144
        %1147 = vmin.xlane.f32.xlu0 %v1146
        %v1148 = vpop.xlane.xlu0 %1147
        %vm1149 = vcmp.eq.f32.partialorder %v1146, %v1148
        %v1150 = vsel %vm1149, %v1145, inf
        %1151 = vmin.xlane.f32.xlu0 %v1150
        %v1152 = vpop.xlane.xlu0 %1151
        %v1153 = vcvt.f32.s32 %v1152
        %v1154 = vcvt.f32.s32 %v1148
        %v1155 = vshll.u32 %v1154, 16
        %v1156 = vadd.s32 %v1155, %v1153
        %v1157 = vand.u32 %v985, 65535
        %v1158 = vshra.s32 %v985, 16
        %v1159 = vcvt.s32.f32 %v1157
        %v1160 = vcvt.s32.f32 %v1158
        %1161 = vmin.xlane.f32.xlu0 %v1160
        %v1162 = vpop.xlane.xlu0 %1161
        %vm1163 = vcmp.eq.f32.partialorder %v1160, %v1162
        %v1164 = vsel %vm1163, %v1159, inf
        %1165 = vmin.xlane.f32.xlu0 %v1164
        %v1166 = vpop.xlane.xlu0 %1165
        %v1167 = vcvt.f32.s32 %v1166
        %v1168 = vcvt.f32.s32 %v1162
        %v1169 = vshll.u32 %v1168, 16
        %v1170 = vadd.s32 %v1169, %v1167
        %v1171 = vand.u32 %v986, 65535
        %v1172 = vshra.s32 %v986, 16
        %v1173 = vcvt.s32.f32 %v1171
        %v1174 = vcvt.s32.f32 %v1172
        %1175 = vmin.xlane.f32.xlu0 %v1174
        %v1176 = vpop.xlane.xlu0 %1175
        %vm1177 = vcmp.eq.f32.partialorder %v1174, %v1176
        %v1178 = vsel %vm1177, %v1173, inf
        %1179 = vmin.xlane.f32.xlu0 %v1178
        %v1180 = vpop.xlane.xlu0 %1179
        %v1181 = vcvt.f32.s32 %v1180
        %v1182 = vcvt.f32.s32 %v1176
        %v1183 = vshll.u32 %v1182, 16
        %v1184 = vadd.s32 %v1183, %v1181
        %v1185 = vand.u32 %v987, 65535
        %v1186 = vshra.s32 %v987, 16
        %v1187 = vcvt.s32.f32 %v1185
        %v1188 = vcvt.s32.f32 %v1186
        %1189 = vmin.xlane.f32.xlu0 %v1188
        %v1190 = vpop.xlane.xlu0 %1189
        %vm1191 = vcmp.eq.f32.partialorder %v1188, %v1190
        %v1192 = vsel %vm1191, %v1187, inf
        %1193 = vmin.xlane.f32.xlu0 %v1192
        %v1194 = vpop.xlane.xlu0 %1193
        %v1195 = vcvt.f32.s32 %v1194
        %v1196 = vcvt.f32.s32 %v1190
        %v1197 = vshll.u32 %v1196, 16
        %v1198 = vadd.s32 %v1197, %v1195
        %v1199 = vand.u32 %v988, 65535
        %v1200 = vshra.s32 %v988, 16
        %v1201 = vcvt.s32.f32 %v1199
        %v1202 = vcvt.s32.f32 %v1200
        %1203 = vmin.xlane.f32.xlu0 %v1202
        %v1204 = vpop.xlane.xlu0 %1203
        %vm1205 = vcmp.eq.f32.partialorder %v1202, %v1204
        %v1206 = vsel %vm1205, %v1201, inf
        %1207 = vmin.xlane.f32.xlu0 %v1206
        %v1208 = vpop.xlane.xlu0 %1207
        %v1209 = vcvt.f32.s32 %v1208
        %v1210 = vcvt.f32.s32 %v1204
        %v1211 = vshll.u32 %v1210, 16
        %v1212 = vadd.s32 %v1211, %v1209
        %vm1213 = vcmp.eq.s32.totalorder %v845, %v1002
        %vm1214 = vcmp.eq.s32.totalorder %v845, %v1016
        %vm1215 = vcmp.eq.s32.totalorder %v845, %v1030
        %vm1216 = vcmp.eq.s32.totalorder %v845, %v1044
        %vm1217 = vcmp.eq.s32.totalorder %v845, %v1058
        %vm1218 = vcmp.eq.s32.totalorder %v845, %v1072
        %vm1219 = vcmp.eq.s32.totalorder %v845, %v1086
        %vm1220 = vcmp.eq.s32.totalorder %v845, %v1100
        %vm1221 = vcmp.eq.s32.totalorder %v845, %v1114
        %vm1222 = vcmp.eq.s32.totalorder %v845, %v1128
        %vm1223 = vcmp.eq.s32.totalorder %v845, %v1142
        %vm1224 = vcmp.eq.s32.totalorder %v845, %v1156
        %vm1225 = vcmp.eq.s32.totalorder %v845, %v1170
        %vm1226 = vcmp.eq.s32.totalorder %v845, %v1184
        %vm1227 = vcmp.eq.s32.totalorder %v845, %v1198
        %vm1228 = vcmp.eq.s32.totalorder %v845, %v1212
        %v1229 = vsel %vm1213, 1, 0
        %v1230 = vsel %vm1214, 1, 0
        %v1231 = vsel %vm1215, 1, 0
        %v1232 = vsel %vm1216, 1, 0
        %v1233 = vsel %vm1217, 1, 0
        %v1234 = vsel %vm1218, 1, 0
        %v1235 = vsel %vm1219, 1, 0
        %v1236 = vsel %vm1220, 1, 0
        %v1237 = vsel %vm1221, 1, 0
        %v1238 = vsel %vm1222, 1, 0
        %v1239 = vsel %vm1223, 1, 0
        %v1240 = vsel %vm1224, 1, 0
        %v1241 = vsel %vm1225, 1, 0
        %v1242 = vsel %vm1226, 1, 0
        %v1243 = vsel %vm1227, 1, 0
        %v1244 = vsel %vm1228, 1, 0
        %v1245 = vcvt.s32.f32 %v1229
        %v1246 = vcvt.s32.f32 %v1230
        %v1247 = vcvt.s32.f32 %v1231
        %v1248 = vcvt.s32.f32 %v1232
        %v1249 = vcvt.s32.f32 %v1233
        %v1250 = vcvt.s32.f32 %v1234
        %v1251 = vcvt.s32.f32 %v1235
        %v1252 = vcvt.s32.f32 %v1236
        %v1253 = vcvt.s32.f32 %v1237
        %v1254 = vcvt.s32.f32 %v1238
        %v1255 = vcvt.s32.f32 %v1239
        %v1256 = vcvt.s32.f32 %v1240
        %v1257 = vcvt.s32.f32 %v1241
        %v1258 = vcvt.s32.f32 %v1242
        %v1259 = vcvt.s32.f32 %v1243
        %v1260 = vcvt.s32.f32 %v1244
        %v1261 = vsel %vm849, %v877, -inf
        %v1262 = vsel %vm849, %v878, -inf
        %v1263 = vsel %vm849, %v879, -inf
        %v1264 = vsel %vm849, %v880, -inf
        %v1265 = vsel %vm849, %v881, -inf
        %v1266 = vsel %vm849, %v882, -inf
        %v1267 = vsel %vm849, %v883, -inf
        %v1268 = vsel %vm849, %v884, -inf
        %v1269 = vsel %vm849, %v885, -inf
        %v1270 = vsel %vm849, %v886, -inf
        %v1271 = vsel %vm849, %v887, -inf
        %v1272 = vsel %vm849, %v888, -inf
        %v1273 = vsel %vm849, %v889, -inf
        %v1274 = vsel %vm849, %v890, -inf
        %v1275 = vsel %vm849, %v891, -inf
        %v1276 = vsel %vm849, %v892, -inf
        %1277 = vmax.xlane.f32.xlu0 %v1261
        %v1278 = vpop.xlane.xlu0 %1277
        %1279 = vmax.xlane.f32.xlu0 %v1262
        %v1280 = vpop.xlane.xlu0 %1279
        %1281 = vmax.xlane.f32.xlu0 %v1263
        %v1282 = vpop.xlane.xlu0 %1281
        %1283 = vmax.xlane.f32.xlu0 %v1264
        %v1284 = vpop.xlane.xlu0 %1283
        %1285 = vmax.xlane.f32.xlu0 %v1265
        %v1286 = vpop.xlane.xlu0 %1285
        %1287 = vmax.xlane.f32.xlu0 %v1266
        %v1288 = vpop.xlane.xlu0 %1287
        %1289 = vmax.xlane.f32.xlu0 %v1267
        %v1290 = vpop.xlane.xlu0 %1289
        %1291 = vmax.xlane.f32.xlu0 %v1268
        %v1292 = vpop.xlane.xlu0 %1291
        %1293 = vmax.xlane.f32.xlu0 %v1269
        %v1294 = vpop.xlane.xlu0 %1293
        %1295 = vmax.xlane.f32.xlu0 %v1270
        %v1296 = vpop.xlane.xlu0 %1295
        %1297 = vmax.xlane.f32.xlu0 %v1271
        %v1298 = vpop.xlane.xlu0 %1297
        %1299 = vmax.xlane.f32.xlu0 %v1272
        %v1300 = vpop.xlane.xlu0 %1299
        %1301 = vmax.xlane.f32.xlu0 %v1273
        %v1302 = vpop.xlane.xlu0 %1301
        %1303 = vmax.xlane.f32.xlu0 %v1274
        %v1304 = vpop.xlane.xlu0 %1303
        %1305 = vmax.xlane.f32.xlu0 %v1275
        %v1306 = vpop.xlane.xlu0 %1305
        %1307 = vmax.xlane.f32.xlu0 %v1276
        %v1308 = vpop.xlane.xlu0 %1307
        %vm1309 = vcmp.ge.f32.partialorder %v1261, %v1278
        %vm1310 = vcmp.ge.f32.partialorder %v1262, %v1280
        %vm1311 = vcmp.ge.f32.partialorder %v1263, %v1282
        %vm1312 = vcmp.ge.f32.partialorder %v1264, %v1284
        %vm1313 = vcmp.ge.f32.partialorder %v1265, %v1286
        %vm1314 = vcmp.ge.f32.partialorder %v1266, %v1288
        %vm1315 = vcmp.ge.f32.partialorder %v1267, %v1290
        %vm1316 = vcmp.ge.f32.partialorder %v1268, %v1292
        %vm1317 = vcmp.ge.f32.partialorder %v1269, %v1294
        %vm1318 = vcmp.ge.f32.partialorder %v1270, %v1296
        %vm1319 = vcmp.ge.f32.partialorder %v1271, %v1298
        %vm1320 = vcmp.ge.f32.partialorder %v1272, %v1300
        %vm1321 = vcmp.ge.f32.partialorder %v1273, %v1302
        %vm1322 = vcmp.ge.f32.partialorder %v1274, %v1304
        %vm1323 = vcmp.ge.f32.partialorder %v1275, %v1306
        %vm1324 = vcmp.ge.f32.partialorder %v1276, %v1308
        %vm1325 = vmand %vm849, %vm1309
        %vm1326 = vmand %vm849, %vm1310
        %vm1327 = vmand %vm849, %vm1311
        %vm1328 = vmand %vm849, %vm1312
        %vm1329 = vmand %vm849, %vm1313
        %vm1330 = vmand %vm849, %vm1314
        %vm1331 = vmand %vm849, %vm1315
        %vm1332 = vmand %vm849, %vm1316
        %vm1333 = vmand %vm849, %vm1317
        %vm1334 = vmand %vm849, %vm1318
        %vm1335 = vmand %vm849, %vm1319
        %vm1336 = vmand %vm849, %vm1320
        %vm1337 = vmand %vm849, %vm1321
        %vm1338 = vmand %vm849, %vm1322
        %vm1339 = vmand %vm849, %vm1323
        %vm1340 = vmand %vm849, %vm1324
        %v1341 = vsel %vm1325, %v845, 128
        %v1342 = vsel %vm1326, %v845, 128
        %v1343 = vsel %vm1327, %v845, 128
        %v1344 = vsel %vm1328, %v845, 128
        %v1345 = vsel %vm1329, %v845, 128
        %v1346 = vsel %vm1330, %v845, 128
        %v1347 = vsel %vm1331, %v845, 128
        %v1348 = vsel %vm1332, %v845, 128
        %v1349 = vsel %vm1333, %v845, 128
        %v1350 = vsel %vm1334, %v845, 128
        %v1351 = vsel %vm1335, %v845, 128
        %v1352 = vsel %vm1336, %v845, 128
        %v1353 = vsel %vm1337, %v845, 128
        %v1354 = vsel %vm1338, %v845, 128
        %v1355 = vsel %vm1339, %v845, 128
        %v1356 = vsel %vm1340, %v845, 128
        %v1357 = vand.u32 %v1341, 65535
        %v1358 = vshra.s32 %v1341, 16
        %v1359 = vcvt.s32.f32 %v1357
        %v1360 = vcvt.s32.f32 %v1358
        %1361 = vmin.xlane.f32.xlu0 %v1360
        %v1362 = vpop.xlane.xlu0 %1361
        %vm1363 = vcmp.eq.f32.partialorder %v1360, %v1362
        %v1364 = vsel %vm1363, %v1359, inf
        %1365 = vmin.xlane.f32.xlu0 %v1364
        %v1366 = vpop.xlane.xlu0 %1365
        %v1367 = vcvt.f32.s32 %v1366
        %v1368 = vcvt.f32.s32 %v1362
        %v1369 = vshll.u32 %v1368, 16
        %v1370 = vadd.s32 %v1369, %v1367
        %v1371 = vand.u32 %v1342, 65535
        %v1372 = vshra.s32 %v1342, 16
        %v1373 = vcvt.s32.f32 %v1371
        %v1374 = vcvt.s32.f32 %v1372
        %1375 = vmin.xlane.f32.xlu0 %v1374
        %v1376 = vpop.xlane.xlu0 %1375
        %vm1377 = vcmp.eq.f32.partialorder %v1374, %v1376
        %v1378 = vsel %vm1377, %v1373, inf
        %1379 = vmin.xlane.f32.xlu0 %v1378
        %v1380 = vpop.xlane.xlu0 %1379
        %v1381 = vcvt.f32.s32 %v1380
        %v1382 = vcvt.f32.s32 %v1376
        %v1383 = vshll.u32 %v1382, 16
        %v1384 = vadd.s32 %v1383, %v1381
        %v1385 = vand.u32 %v1343, 65535
        %v1386 = vshra.s32 %v1343, 16
        %v1387 = vcvt.s32.f32 %v1385
        %v1388 = vcvt.s32.f32 %v1386
        %1389 = vmin.xlane.f32.xlu0 %v1388
        %v1390 = vpop.xlane.xlu0 %1389
        %vm1391 = vcmp.eq.f32.partialorder %v1388, %v1390
        %v1392 = vsel %vm1391, %v1387, inf
        %1393 = vmin.xlane.f32.xlu0 %v1392
        %v1394 = vpop.xlane.xlu0 %1393
        %v1395 = vcvt.f32.s32 %v1394
        %v1396 = vcvt.f32.s32 %v1390
        %v1397 = vshll.u32 %v1396, 16
        %v1398 = vadd.s32 %v1397, %v1395
        %v1399 = vand.u32 %v1344, 65535
        %v1400 = vshra.s32 %v1344, 16
        %v1401 = vcvt.s32.f32 %v1399
        %v1402 = vcvt.s32.f32 %v1400
        %1403 = vmin.xlane.f32.xlu0 %v1402
        %v1404 = vpop.xlane.xlu0 %1403
        %vm1405 = vcmp.eq.f32.partialorder %v1402, %v1404
        %v1406 = vsel %vm1405, %v1401, inf
        %1407 = vmin.xlane.f32.xlu0 %v1406
        %v1408 = vpop.xlane.xlu0 %1407
        %v1409 = vcvt.f32.s32 %v1408
        %v1410 = vcvt.f32.s32 %v1404
        %v1411 = vshll.u32 %v1410, 16
        %v1412 = vadd.s32 %v1411, %v1409
        %v1413 = vand.u32 %v1345, 65535
        %v1414 = vshra.s32 %v1345, 16
        %v1415 = vcvt.s32.f32 %v1413
        %v1416 = vcvt.s32.f32 %v1414
        %1417 = vmin.xlane.f32.xlu0 %v1416
        %v1418 = vpop.xlane.xlu0 %1417
        %vm1419 = vcmp.eq.f32.partialorder %v1416, %v1418
        %v1420 = vsel %vm1419, %v1415, inf
        %1421 = vmin.xlane.f32.xlu0 %v1420
        %v1422 = vpop.xlane.xlu0 %1421
        %v1423 = vcvt.f32.s32 %v1422
        %v1424 = vcvt.f32.s32 %v1418
        %v1425 = vshll.u32 %v1424, 16
        %v1426 = vadd.s32 %v1425, %v1423
        %v1427 = vand.u32 %v1346, 65535
        %v1428 = vshra.s32 %v1346, 16
        %v1429 = vcvt.s32.f32 %v1427
        %v1430 = vcvt.s32.f32 %v1428
        %1431 = vmin.xlane.f32.xlu0 %v1430
        %v1432 = vpop.xlane.xlu0 %1431
        %vm1433 = vcmp.eq.f32.partialorder %v1430, %v1432
        %v1434 = vsel %vm1433, %v1429, inf
        %1435 = vmin.xlane.f32.xlu0 %v1434
        %v1436 = vpop.xlane.xlu0 %1435
        %v1437 = vcvt.f32.s32 %v1436
        %v1438 = vcvt.f32.s32 %v1432
        %v1439 = vshll.u32 %v1438, 16
        %v1440 = vadd.s32 %v1439, %v1437
        %v1441 = vand.u32 %v1347, 65535
        %v1442 = vshra.s32 %v1347, 16
        %v1443 = vcvt.s32.f32 %v1441
        %v1444 = vcvt.s32.f32 %v1442
        %1445 = vmin.xlane.f32.xlu0 %v1444
        %v1446 = vpop.xlane.xlu0 %1445
        %vm1447 = vcmp.eq.f32.partialorder %v1444, %v1446
        %v1448 = vsel %vm1447, %v1443, inf
        %1449 = vmin.xlane.f32.xlu0 %v1448
        %v1450 = vpop.xlane.xlu0 %1449
        %v1451 = vcvt.f32.s32 %v1450
        %v1452 = vcvt.f32.s32 %v1446
        %v1453 = vshll.u32 %v1452, 16
        %v1454 = vadd.s32 %v1453, %v1451
        %v1455 = vand.u32 %v1348, 65535
        %v1456 = vshra.s32 %v1348, 16
        %v1457 = vcvt.s32.f32 %v1455
        %v1458 = vcvt.s32.f32 %v1456
        %1459 = vmin.xlane.f32.xlu0 %v1458
        %v1460 = vpop.xlane.xlu0 %1459
        %vm1461 = vcmp.eq.f32.partialorder %v1458, %v1460
        %v1462 = vsel %vm1461, %v1457, inf
        %1463 = vmin.xlane.f32.xlu0 %v1462
        %v1464 = vpop.xlane.xlu0 %1463
        %v1465 = vcvt.f32.s32 %v1464
        %v1466 = vcvt.f32.s32 %v1460
        %v1467 = vshll.u32 %v1466, 16
        %v1468 = vadd.s32 %v1467, %v1465
        %v1469 = vand.u32 %v1349, 65535
        %v1470 = vshra.s32 %v1349, 16
        %v1471 = vcvt.s32.f32 %v1469
        %v1472 = vcvt.s32.f32 %v1470
        %1473 = vmin.xlane.f32.xlu0 %v1472
        %v1474 = vpop.xlane.xlu0 %1473
        %vm1475 = vcmp.eq.f32.partialorder %v1472, %v1474
        %v1476 = vsel %vm1475, %v1471, inf
        %1477 = vmin.xlane.f32.xlu0 %v1476
        %v1478 = vpop.xlane.xlu0 %1477
        %v1479 = vcvt.f32.s32 %v1478
        %v1480 = vcvt.f32.s32 %v1474
        %v1481 = vshll.u32 %v1480, 16
        %v1482 = vadd.s32 %v1481, %v1479
        %v1483 = vand.u32 %v1350, 65535
        %v1484 = vshra.s32 %v1350, 16
        %v1485 = vcvt.s32.f32 %v1483
        %v1486 = vcvt.s32.f32 %v1484
        %1487 = vmin.xlane.f32.xlu0 %v1486
        %v1488 = vpop.xlane.xlu0 %1487
        %vm1489 = vcmp.eq.f32.partialorder %v1486, %v1488
        %v1490 = vsel %vm1489, %v1485, inf
        %1491 = vmin.xlane.f32.xlu0 %v1490
        %v1492 = vpop.xlane.xlu0 %1491
        %v1493 = vcvt.f32.s32 %v1492
        %v1494 = vcvt.f32.s32 %v1488
        %v1495 = vshll.u32 %v1494, 16
        %v1496 = vadd.s32 %v1495, %v1493
        %v1497 = vand.u32 %v1351, 65535
        %v1498 = vshra.s32 %v1351, 16
        %v1499 = vcvt.s32.f32 %v1497
        %v1500 = vcvt.s32.f32 %v1498
        %1501 = vmin.xlane.f32.xlu0 %v1500
        %v1502 = vpop.xlane.xlu0 %1501
        %vm1503 = vcmp.eq.f32.partialorder %v1500, %v1502
        %v1504 = vsel %vm1503, %v1499, inf
        %1505 = vmin.xlane.f32.xlu0 %v1504
        %v1506 = vpop.xlane.xlu0 %1505
        %v1507 = vcvt.f32.s32 %v1506
        %v1508 = vcvt.f32.s32 %v1502
        %v1509 = vshll.u32 %v1508, 16
        %v1510 = vadd.s32 %v1509, %v1507
        %v1511 = vand.u32 %v1352, 65535
        %v1512 = vshra.s32 %v1352, 16
        %v1513 = vcvt.s32.f32 %v1511
        %v1514 = vcvt.s32.f32 %v1512
        %1515 = vmin.xlane.f32.xlu0 %v1514
        %v1516 = vpop.xlane.xlu0 %1515
        %vm1517 = vcmp.eq.f32.partialorder %v1514, %v1516
        %v1518 = vsel %vm1517, %v1513, inf
        %1519 = vmin.xlane.f32.xlu0 %v1518
        %v1520 = vpop.xlane.xlu0 %1519
        %v1521 = vcvt.f32.s32 %v1520
        %v1522 = vcvt.f32.s32 %v1516
        %v1523 = vshll.u32 %v1522, 16
        %v1524 = vadd.s32 %v1523, %v1521
        %v1525 = vand.u32 %v1353, 65535
        %v1526 = vshra.s32 %v1353, 16
        %v1527 = vcvt.s32.f32 %v1525
        %v1528 = vcvt.s32.f32 %v1526
        %1529 = vmin.xlane.f32.xlu0 %v1528
        %v1530 = vpop.xlane.xlu0 %1529
        %vm1531 = vcmp.eq.f32.partialorder %v1528, %v1530
        %v1532 = vsel %vm1531, %v1527, inf
        %1533 = vmin.xlane.f32.xlu0 %v1532
        %v1534 = vpop.xlane.xlu0 %1533
        %v1535 = vcvt.f32.s32 %v1534
        %v1536 = vcvt.f32.s32 %v1530
        %v1537 = vshll.u32 %v1536, 16
        %v1538 = vadd.s32 %v1537, %v1535
        %v1539 = vand.u32 %v1354, 65535
        %v1540 = vshra.s32 %v1354, 16
        %v1541 = vcvt.s32.f32 %v1539
        %v1542 = vcvt.s32.f32 %v1540
        %1543 = vmin.xlane.f32.xlu0 %v1542
        %v1544 = vpop.xlane.xlu0 %1543
        %vm1545 = vcmp.eq.f32.partialorder %v1542, %v1544
        %v1546 = vsel %vm1545, %v1541, inf
        %1547 = vmin.xlane.f32.xlu0 %v1546
        %v1548 = vpop.xlane.xlu0 %1547
        %v1549 = vcvt.f32.s32 %v1548
        %v1550 = vcvt.f32.s32 %v1544
        %v1551 = vshll.u32 %v1550, 16
        %v1552 = vadd.s32 %v1551, %v1549
        %v1553 = vand.u32 %v1355, 65535
        %v1554 = vshra.s32 %v1355, 16
        %v1555 = vcvt.s32.f32 %v1553
        %v1556 = vcvt.s32.f32 %v1554
        %1557 = vmin.xlane.f32.xlu0 %v1556
        %v1558 = vpop.xlane.xlu0 %1557
        %vm1559 = vcmp.eq.f32.partialorder %v1556, %v1558
        %v1560 = vsel %vm1559, %v1555, inf
        %1561 = vmin.xlane.f32.xlu0 %v1560
        %v1562 = vpop.xlane.xlu0 %1561
        %v1563 = vcvt.f32.s32 %v1562
        %v1564 = vcvt.f32.s32 %v1558
        %v1565 = vshll.u32 %v1564, 16
        %v1566 = vadd.s32 %v1565, %v1563
        %v1567 = vand.u32 %v1356, 65535
        %v1568 = vshra.s32 %v1356, 16
        %v1569 = vcvt.s32.f32 %v1567
        %v1570 = vcvt.s32.f32 %v1568
        %1571 = vmin.xlane.f32.xlu0 %v1570
        %v1572 = vpop.xlane.xlu0 %1571
        %vm1573 = vcmp.eq.f32.partialorder %v1570, %v1572
        %v1574 = vsel %vm1573, %v1569, inf
        %1575 = vmin.xlane.f32.xlu0 %v1574
        %v1576 = vpop.xlane.xlu0 %1575
        %v1577 = vcvt.f32.s32 %v1576
        %v1578 = vcvt.f32.s32 %v1572
        %v1579 = vshll.u32 %v1578, 16
        %v1580 = vadd.s32 %v1579, %v1577
        %vm1581 = vcmp.eq.s32.totalorder %v845, %v1370
        %vm1582 = vcmp.eq.s32.totalorder %v845, %v1384
        %vm1583 = vcmp.eq.s32.totalorder %v845, %v1398
        %vm1584 = vcmp.eq.s32.totalorder %v845, %v1412
        %vm1585 = vcmp.eq.s32.totalorder %v845, %v1426
        %vm1586 = vcmp.eq.s32.totalorder %v845, %v1440
        %vm1587 = vcmp.eq.s32.totalorder %v845, %v1454
        %vm1588 = vcmp.eq.s32.totalorder %v845, %v1468
        %vm1589 = vcmp.eq.s32.totalorder %v845, %v1482
        %vm1590 = vcmp.eq.s32.totalorder %v845, %v1496
        %vm1591 = vcmp.eq.s32.totalorder %v845, %v1510
        %vm1592 = vcmp.eq.s32.totalorder %v845, %v1524
        %vm1593 = vcmp.eq.s32.totalorder %v845, %v1538
        %vm1594 = vcmp.eq.s32.totalorder %v845, %v1552
        %vm1595 = vcmp.eq.s32.totalorder %v845, %v1566
        %vm1596 = vcmp.eq.s32.totalorder %v845, %v1580
        %v1597 = vsel %vm1581, 1, 0
        %v1598 = vsel %vm1582, 1, 0
        %v1599 = vsel %vm1583, 1, 0
        %v1600 = vsel %vm1584, 1, 0
        %v1601 = vsel %vm1585, 1, 0
        %v1602 = vsel %vm1586, 1, 0
        %v1603 = vsel %vm1587, 1, 0
        %v1604 = vsel %vm1588, 1, 0
        %v1605 = vsel %vm1589, 1, 0
        %v1606 = vsel %vm1590, 1, 0
        %v1607 = vsel %vm1591, 1, 0
        %v1608 = vsel %vm1592, 1, 0
        %v1609 = vsel %vm1593, 1, 0
        %v1610 = vsel %vm1594, 1, 0
        %v1611 = vsel %vm1595, 1, 0
        %v1612 = vsel %vm1596, 1, 0
        %v1613 = vcvt.s32.f32 %v1597
        %v1614 = vcvt.s32.f32 %v1598
        %v1615 = vcvt.s32.f32 %v1599
        %v1616 = vcvt.s32.f32 %v1600
        %v1617 = vcvt.s32.f32 %v1601
        %v1618 = vcvt.s32.f32 %v1602
        %v1619 = vcvt.s32.f32 %v1603
        %v1620 = vcvt.s32.f32 %v1604
        %v1621 = vcvt.s32.f32 %v1605
        %v1622 = vcvt.s32.f32 %v1606
        %v1623 = vcvt.s32.f32 %v1607
        %v1624 = vcvt.s32.f32 %v1608
        %v1625 = vcvt.s32.f32 %v1609
        %v1626 = vcvt.s32.f32 %v1610
        %v1627 = vcvt.s32.f32 %v1611
        %v1628 = vcvt.s32.f32 %v1612
        %v1629 = vmul.f32 %v782, %v782
        %v1630 = vmul.f32 %v785, %v785
        %v1631 = vmul.f32 %v790, %v790
        %v1632 = vmul.f32 %v793, %v793
        %v1633 = vmul.f32 %v798, %v798
        %v1634 = vmul.f32 %v801, %v801
        %v1635 = vmul.f32 %v806, %v806
        %v1636 = vmul.f32 %v809, %v809
        %v1637 = vmul.f32 %v814, %v814
        %v1638 = vmul.f32 %v817, %v817
        %v1639 = vmul.f32 %v822, %v822
        %v1640 = vmul.f32 %v825, %v825
        %v1641 = vmul.f32 %v830, %v830
        %v1642 = vmul.f32 %v833, %v833
        %v1643 = vmul.f32 %v838, %v838
        %v1644 = vmul.f32 %v841, %v841
        %v1645 = vsel %vm855, %v1629, 0.0
        %v1646 = vsel %vm855, %v1630, 0.0
        %v1647 = vsel %vm855, %v1631, 0.0
        %v1648 = vsel %vm855, %v1632, 0.0
        %v1649 = vsel %vm855, %v1633, 0.0
        %v1650 = vsel %vm855, %v1634, 0.0
        %v1651 = vsel %vm855, %v1635, 0.0
        %v1652 = vsel %vm855, %v1636, 0.0
        %v1653 = vsel %vm855, %v1637, 0.0
        %v1654 = vsel %vm855, %v1638, 0.0
        %v1655 = vsel %vm855, %v1639, 0.0
        %v1656 = vsel %vm855, %v1640, 0.0
        %v1657 = vsel %vm855, %v1641, 0.0
        %v1658 = vsel %vm855, %v1642, 0.0
        %v1659 = vsel %vm855, %v1643, 0.0
        %v1660 = vsel %vm855, %v1644, 0.0
        %1661 = vadd.xlane.f32.xlu0 %v1645
        %v1662 = vpop.xlane.xlu0 %1661
        %1663 = vadd.xlane.f32.xlu0 %v1646
        %v1664 = vpop.xlane.xlu0 %1663
        %1665 = vadd.xlane.f32.xlu0 %v1647
        %v1666 = vpop.xlane.xlu0 %1665
        %1667 = vadd.xlane.f32.xlu0 %v1648
        %v1668 = vpop.xlane.xlu0 %1667
        %1669 = vadd.xlane.f32.xlu0 %v1649
        %v1670 = vpop.xlane.xlu0 %1669
        %1671 = vadd.xlane.f32.xlu0 %v1650
        %v1672 = vpop.xlane.xlu0 %1671
        %1673 = vadd.xlane.f32.xlu0 %v1651
        %v1674 = vpop.xlane.xlu0 %1673
        %1675 = vadd.xlane.f32.xlu0 %v1652
        %v1676 = vpop.xlane.xlu0 %1675
        %1677 = vadd.xlane.f32.xlu0 %v1653
        %v1678 = vpop.xlane.xlu0 %1677
        %1679 = vadd.xlane.f32.xlu0 %v1654
        %v1680 = vpop.xlane.xlu0 %1679
        %1681 = vadd.xlane.f32.xlu0 %v1655
        %v1682 = vpop.xlane.xlu0 %1681
        %1683 = vadd.xlane.f32.xlu0 %v1656
        %v1684 = vpop.xlane.xlu0 %1683
        %1685 = vadd.xlane.f32.xlu0 %v1657
        %v1686 = vpop.xlane.xlu0 %1685
        %1687 = vadd.xlane.f32.xlu0 %v1658
        %v1688 = vpop.xlane.xlu0 %1687
        %1689 = vadd.xlane.f32.xlu0 %v1659
        %v1690 = vpop.xlane.xlu0 %1689
        %1691 = vadd.xlane.f32.xlu0 %v1660
        %v1692 = vpop.xlane.xlu0 %1691
        %v1693 = vrsqrt.pop %v1662
        %v1694 = vmul.f32 %v1662, %v1693
        %vm1695 = vcmp.eq.f32.partialorder %v1662, inf
        %v1696 = vsel %vm1695, %v1662, %v1694
        %vm1697 = vcmp.eq.f32.partialorder %v1662, 0.0
        %v1698 = vand.u32 %v1662, 2147483648
        %v1699 = vsel %vm1697, %v1698, %v1696
        %v1700 = vrsqrt.pop %v1664
        %v1701 = vmul.f32 %v1664, %v1700
        %vm1702 = vcmp.eq.f32.partialorder %v1664, inf
        %v1703 = vsel %vm1702, %v1664, %v1701
        %vm1704 = vcmp.eq.f32.partialorder %v1664, 0.0
        %v1705 = vand.u32 %v1664, 2147483648
        %v1706 = vsel %vm1704, %v1705, %v1703
        %v1707 = vrsqrt.pop %v1666
        %v1708 = vmul.f32 %v1666, %v1707
        %vm1709 = vcmp.eq.f32.partialorder %v1666, inf
        %v1710 = vsel %vm1709, %v1666, %v1708
        %vm1711 = vcmp.eq.f32.partialorder %v1666, 0.0
        %v1712 = vand.u32 %v1666, 2147483648
        %v1713 = vsel %vm1711, %v1712, %v1710
        %v1714 = vrsqrt.pop %v1668
        %v1715 = vmul.f32 %v1668, %v1714
        %vm1716 = vcmp.eq.f32.partialorder %v1668, inf
        %v1717 = vsel %vm1716, %v1668, %v1715
        %vm1718 = vcmp.eq.f32.partialorder %v1668, 0.0
        %v1719 = vand.u32 %v1668, 2147483648
        %v1720 = vsel %vm1718, %v1719, %v1717
        %v1721 = vrsqrt.pop %v1670
        %v1722 = vmul.f32 %v1670, %v1721
        %vm1723 = vcmp.eq.f32.partialorder %v1670, inf
        %v1724 = vsel %vm1723, %v1670, %v1722
        %vm1725 = vcmp.eq.f32.partialorder %v1670, 0.0
        %v1726 = vand.u32 %v1670, 2147483648
        %v1727 = vsel %vm1725, %v1726, %v1724
        %v1728 = vrsqrt.pop %v1672
        %v1729 = vmul.f32 %v1672, %v1728
        %vm1730 = vcmp.eq.f32.partialorder %v1672, inf
        %v1731 = vsel %vm1730, %v1672, %v1729
        %vm1732 = vcmp.eq.f32.partialorder %v1672, 0.0
        %v1733 = vand.u32 %v1672, 2147483648
        %v1734 = vsel %vm1732, %v1733, %v1731
        %v1735 = vrsqrt.pop %v1674
        %v1736 = vmul.f32 %v1674, %v1735
        %vm1737 = vcmp.eq.f32.partialorder %v1674, inf
        %v1738 = vsel %vm1737, %v1674, %v1736
        %vm1739 = vcmp.eq.f32.partialorder %v1674, 0.0
        %v1740 = vand.u32 %v1674, 2147483648
        %v1741 = vsel %vm1739, %v1740, %v1738
        %v1742 = vrsqrt.pop %v1676
        %v1743 = vmul.f32 %v1676, %v1742
        %vm1744 = vcmp.eq.f32.partialorder %v1676, inf
        %v1745 = vsel %vm1744, %v1676, %v1743
        %vm1746 = vcmp.eq.f32.partialorder %v1676, 0.0
        %v1747 = vand.u32 %v1676, 2147483648
        %v1748 = vsel %vm1746, %v1747, %v1745
        %v1749 = vrsqrt.pop %v1678
        %v1750 = vmul.f32 %v1678, %v1749
        %vm1751 = vcmp.eq.f32.partialorder %v1678, inf
        %v1752 = vsel %vm1751, %v1678, %v1750
        %vm1753 = vcmp.eq.f32.partialorder %v1678, 0.0
        %v1754 = vand.u32 %v1678, 2147483648
        %v1755 = vsel %vm1753, %v1754, %v1752
        %v1756 = vrsqrt.pop %v1680
        %v1757 = vmul.f32 %v1680, %v1756
        %vm1758 = vcmp.eq.f32.partialorder %v1680, inf
        %v1759 = vsel %vm1758, %v1680, %v1757
        %vm1760 = vcmp.eq.f32.partialorder %v1680, 0.0
        %v1761 = vand.u32 %v1680, 2147483648
        %v1762 = vsel %vm1760, %v1761, %v1759
        %v1763 = vrsqrt.pop %v1682
        %v1764 = vmul.f32 %v1682, %v1763
        %vm1765 = vcmp.eq.f32.partialorder %v1682, inf
        %v1766 = vsel %vm1765, %v1682, %v1764
        %vm1767 = vcmp.eq.f32.partialorder %v1682, 0.0
        %v1768 = vand.u32 %v1682, 2147483648
        %v1769 = vsel %vm1767, %v1768, %v1766
        %v1770 = vrsqrt.pop %v1684
        %v1771 = vmul.f32 %v1684, %v1770
        %vm1772 = vcmp.eq.f32.partialorder %v1684, inf
        %v1773 = vsel %vm1772, %v1684, %v1771
        %vm1774 = vcmp.eq.f32.partialorder %v1684, 0.0
        %v1775 = vand.u32 %v1684, 2147483648
        %v1776 = vsel %vm1774, %v1775, %v1773
        %v1777 = vrsqrt.pop %v1686
        %v1778 = vmul.f32 %v1686, %v1777
        %vm1779 = vcmp.eq.f32.partialorder %v1686, inf
        %v1780 = vsel %vm1779, %v1686, %v1778
        %vm1781 = vcmp.eq.f32.partialorder %v1686, 0.0
        %v1782 = vand.u32 %v1686, 2147483648
        %v1783 = vsel %vm1781, %v1782, %v1780
        %v1784 = vrsqrt.pop %v1688
        %v1785 = vmul.f32 %v1688, %v1784
        %vm1786 = vcmp.eq.f32.partialorder %v1688, inf
        %v1787 = vsel %vm1786, %v1688, %v1785
        %vm1788 = vcmp.eq.f32.partialorder %v1688, 0.0
        %v1789 = vand.u32 %v1688, 2147483648
        %v1790 = vsel %vm1788, %v1789, %v1787
        %v1791 = vrsqrt.pop %v1690
        %v1792 = vmul.f32 %v1690, %v1791
        %vm1793 = vcmp.eq.f32.partialorder %v1690, inf
        %v1794 = vsel %vm1793, %v1690, %v1792
        %vm1795 = vcmp.eq.f32.partialorder %v1690, 0.0
        %v1796 = vand.u32 %v1690, 2147483648
        %v1797 = vsel %vm1795, %v1796, %v1794
        %v1798 = vrsqrt.pop %v1692
        %v1799 = vmul.f32 %v1692, %v1798
        %vm1800 = vcmp.eq.f32.partialorder %v1692, inf
        %v1801 = vsel %vm1800, %v1692, %v1799
        %vm1802 = vcmp.eq.f32.partialorder %v1692, 0.0
        %v1803 = vand.u32 %v1692, 2147483648
        %v1804 = vsel %vm1802, %v1803, %v1801
        %v1805 = vmax.f32 %v1699, 1e-12
        %v1806 = vmax.f32 %v1706, 1e-12
        %v1807 = vmax.f32 %v1713, 1e-12
        %v1808 = vmax.f32 %v1720, 1e-12
        %v1809 = vmax.f32 %v1727, 1e-12
        %v1810 = vmax.f32 %v1734, 1e-12
        %v1811 = vmax.f32 %v1741, 1e-12
        %v1812 = vmax.f32 %v1748, 1e-12
        %v1813 = vmax.f32 %v1755, 1e-12
        %v1814 = vmax.f32 %v1762, 1e-12
        %v1815 = vmax.f32 %v1769, 1e-12
        %v1816 = vmax.f32 %v1776, 1e-12
        %v1817 = vmax.f32 %v1783, 1e-12
        %v1818 = vmax.f32 %v1790, 1e-12
        %v1819 = vmax.f32 %v1797, 1e-12
        %v1820 = vmax.f32 %v1804, 1e-12
        %v1821 = vrcp.pop %v1805
        %v1822 = vmul.f32 %v782, %v1821
        %v1823 = vrcp.pop %v1806
        %v1824 = vmul.f32 %v785, %v1823
        %v1825 = vrcp.pop %v1807
        %v1826 = vmul.f32 %v790, %v1825
        %v1827 = vrcp.pop %v1808
        %v1828 = vmul.f32 %v793, %v1827
        %v1829 = vrcp.pop %v1809
        %v1830 = vmul.f32 %v798, %v1829
        %v1831 = vrcp.pop %v1810
        %v1832 = vmul.f32 %v801, %v1831
        %v1833 = vrcp.pop %v1811
        %v1834 = vmul.f32 %v806, %v1833
        %v1835 = vrcp.pop %v1812
        %v1836 = vmul.f32 %v809, %v1835
        %v1837 = vrcp.pop %v1813
        %v1838 = vmul.f32 %v814, %v1837
        %v1839 = vrcp.pop %v1814
        %v1840 = vmul.f32 %v817, %v1839
        %v1841 = vrcp.pop %v1815
        %v1842 = vmul.f32 %v822, %v1841
        %v1843 = vrcp.pop %v1816
        %v1844 = vmul.f32 %v825, %v1843
        %v1845 = vrcp.pop %v1817
        %v1846 = vmul.f32 %v830, %v1845
        %v1847 = vrcp.pop %v1818
        %v1848 = vmul.f32 %v833, %v1847
        %v1849 = vrcp.pop %v1819
        %v1850 = vmul.f32 %v838, %v1849
        %v1851 = vrcp.pop %v1820
        %v1852 = vmul.f32 %v841, %v1851
        %v1853 = vxor.u32 %v782, 2147483648
        %v1854 = vxor.u32 %v785, 2147483648
        %v1855 = vxor.u32 %v790, 2147483648
        %v1856 = vxor.u32 %v793, 2147483648
        %v1857 = vxor.u32 %v798, 2147483648
        %v1858 = vxor.u32 %v801, 2147483648
        %v1859 = vxor.u32 %v806, 2147483648
        %v1860 = vxor.u32 %v809, 2147483648
        %v1861 = vxor.u32 %v814, 2147483648
        %v1862 = vxor.u32 %v817, 2147483648
        %v1863 = vxor.u32 %v822, 2147483648
        %v1864 = vxor.u32 %v825, 2147483648
        %v1865 = vxor.u32 %v830, 2147483648
        %v1866 = vxor.u32 %v833, 2147483648
        %v1867 = vxor.u32 %v838, 2147483648
        %v1868 = vxor.u32 %v841, 2147483648
        %v1869 = vmul.f32 %v1853, 1.442695
        %v1870 = vpow.pop %v1869
        %v1871 = vmul.f32 %v1854, 1.442695
        %v1872 = vpow.pop %v1871
        %v1873 = vmul.f32 %v1855, 1.442695
        %v1874 = vpow.pop %v1873
        %v1875 = vmul.f32 %v1856, 1.442695
        %v1876 = vpow.pop %v1875
        %v1877 = vmul.f32 %v1857, 1.442695
        %v1878 = vpow.pop %v1877
        %v1879 = vmul.f32 %v1858, 1.442695
        %v1880 = vpow.pop %v1879
        %v1881 = vmul.f32 %v1859, 1.442695
        %v1882 = vpow.pop %v1881
        %v1883 = vmul.f32 %v1860, 1.442695
        %v1884 = vpow.pop %v1883
        %v1885 = vmul.f32 %v1861, 1.442695
        %v1886 = vpow.pop %v1885
        %v1887 = vmul.f32 %v1862, 1.442695
        %v1888 = vpow.pop %v1887
        %v1889 = vmul.f32 %v1863, 1.442695
        %v1890 = vpow.pop %v1889
        %v1891 = vmul.f32 %v1864, 1.442695
        %v1892 = vpow.pop %v1891
        %v1893 = vmul.f32 %v1865, 1.442695
        %v1894 = vpow.pop %v1893
        %v1895 = vmul.f32 %v1866, 1.442695
        %v1896 = vpow.pop %v1895
        %v1897 = vmul.f32 %v1867, 1.442695
        %v1898 = vpow.pop %v1897
        %v1899 = vmul.f32 %v1868, 1.442695
        %v1900 = vpow.pop %v1899
        %v1901 = vadd.f32 %v1870, 1.0
        %v1902 = vadd.f32 %v1872, 1.0
        %v1903 = vadd.f32 %v1874, 1.0
        %v1904 = vadd.f32 %v1876, 1.0
        %v1905 = vadd.f32 %v1878, 1.0
        %v1906 = vadd.f32 %v1880, 1.0
        %v1907 = vadd.f32 %v1882, 1.0
        %v1908 = vadd.f32 %v1884, 1.0
        %v1909 = vadd.f32 %v1886, 1.0
        %v1910 = vadd.f32 %v1888, 1.0
        %v1911 = vadd.f32 %v1890, 1.0
        %v1912 = vadd.f32 %v1892, 1.0
        %v1913 = vadd.f32 %v1894, 1.0
        %v1914 = vadd.f32 %v1896, 1.0
        %v1915 = vadd.f32 %v1898, 1.0
        %v1916 = vadd.f32 %v1900, 1.0
        %v1917 = vrcp.pop %v1901
        %v1918 = vmul.f32 1.0, %v1917
        %v1919 = vrcp.pop %v1902
        %v1920 = vmul.f32 1.0, %v1919
        %v1921 = vrcp.pop %v1903
        %v1922 = vmul.f32 1.0, %v1921
        %v1923 = vrcp.pop %v1904
        %v1924 = vmul.f32 1.0, %v1923
        %v1925 = vrcp.pop %v1905
        %v1926 = vmul.f32 1.0, %v1925
        %v1927 = vrcp.pop %v1906
        %v1928 = vmul.f32 1.0, %v1927
        %v1929 = vrcp.pop %v1907
        %v1930 = vmul.f32 1.0, %v1929
        %v1931 = vrcp.pop %v1908
        %v1932 = vmul.f32 1.0, %v1931
        %v1933 = vrcp.pop %v1909
        %v1934 = vmul.f32 1.0, %v1933
        %v1935 = vrcp.pop %v1910
        %v1936 = vmul.f32 1.0, %v1935
        %v1937 = vrcp.pop %v1911
        %v1938 = vmul.f32 1.0, %v1937
        %v1939 = vrcp.pop %v1912
        %v1940 = vmul.f32 1.0, %v1939
        %v1941 = vrcp.pop %v1913
        %v1942 = vmul.f32 1.0, %v1941
        %v1943 = vrcp.pop %v1914
        %v1944 = vmul.f32 1.0, %v1943
        %v1945 = vrcp.pop %v1915
        %v1946 = vmul.f32 1.0, %v1945
        %v1947 = vrcp.pop %v1916
        %v1948 = vmul.f32 1.0, %v1947
        %v1949 = vtanh.pop %v782
        %v1950 = vtanh.pop %v785
        %v1951 = vtanh.pop %v790
        %v1952 = vtanh.pop %v793
        %v1953 = vtanh.pop %v798
        %v1954 = vtanh.pop %v801
        %v1955 = vtanh.pop %v806
        %v1956 = vtanh.pop %v809
        %v1957 = vtanh.pop %v814
        %v1958 = vtanh.pop %v817
        %v1959 = vtanh.pop %v822
        %v1960 = vtanh.pop %v825
        %v1961 = vtanh.pop %v830
        %v1962 = vtanh.pop %v833
        %v1963 = vtanh.pop %v838
        %v1964 = vtanh.pop %v841
        %v1965 = vmul.f32 %v1918, 0.995
        %v1966 = vmul.f32 %v1920, 0.995
        %v1967 = vmul.f32 %v1922, 0.995
        %v1968 = vmul.f32 %v1924, 0.995
        %v1969 = vmul.f32 %v1926, 0.995
        %v1970 = vmul.f32 %v1928, 0.995
        %v1971 = vmul.f32 %v1930, 0.995
        %v1972 = vmul.f32 %v1932, 0.995
        %v1973 = vmul.f32 %v1934, 0.995
        %v1974 = vmul.f32 %v1936, 0.995
        %v1975 = vmul.f32 %v1938, 0.995
        %v1976 = vmul.f32 %v1940, 0.995
        %v1977 = vmul.f32 %v1942, 0.995
        %v1978 = vmul.f32 %v1944, 0.995
        %v1979 = vmul.f32 %v1946, 0.995
        %v1980 = vmul.f32 %v1948, 0.995
        %v1981 = vadd.f32 %v1965, 0.005
        %v1982 = vadd.f32 %v1966, 0.005
        %v1983 = vadd.f32 %v1967, 0.005
        %v1984 = vadd.f32 %v1968, 0.005
        %v1985 = vadd.f32 %v1969, 0.005
        %v1986 = vadd.f32 %v1970, 0.005
        %v1987 = vadd.f32 %v1971, 0.005
        %v1988 = vadd.f32 %v1972, 0.005
        %v1989 = vadd.f32 %v1973, 0.005
        %v1990 = vadd.f32 %v1974, 0.005
        %v1991 = vadd.f32 %v1975, 0.005
        %v1992 = vadd.f32 %v1976, 0.005
        %v1993 = vadd.f32 %v1977, 0.005
        %v1994 = vadd.f32 %v1978, 0.005
        %v1995 = vadd.f32 %v1979, 0.005
        %v1996 = vadd.f32 %v1980, 0.005
        %v1997 = vmul.f32 %v1918, 0.999
        %v1998 = vmul.f32 %v1920, 0.999
        %v1999 = vmul.f32 %v1922, 0.999
        %v2000 = vmul.f32 %v1924, 0.999
        %v2001 = vmul.f32 %v1926, 0.999
        %v2002 = vmul.f32 %v1928, 0.999
        %v2003 = vmul.f32 %v1930, 0.999
        %v2004 = vmul.f32 %v1932, 0.999
        %v2005 = vmul.f32 %v1934, 0.999
        %v2006 = vmul.f32 %v1936, 0.999
        %v2007 = vmul.f32 %v1938, 0.999
        %v2008 = vmul.f32 %v1940, 0.999
        %v2009 = vmul.f32 %v1942, 0.999
        %v2010 = vmul.f32 %v1944, 0.999
        %v2011 = vmul.f32 %v1946, 0.999
        %v2012 = vmul.f32 %v1948, 0.999
        %v2013 = vadd.f32 %v1997, 0.001
        %v2014 = vadd.f32 %v1998, 0.001
        %v2015 = vadd.f32 %v1999, 0.001
        %v2016 = vadd.f32 %v2000, 0.001
        %v2017 = vadd.f32 %v2001, 0.001
        %v2018 = vadd.f32 %v2002, 0.001
        %v2019 = vadd.f32 %v2003, 0.001
        %v2020 = vadd.f32 %v2004, 0.001
        %v2021 = vadd.f32 %v2005, 0.001
        %v2022 = vadd.f32 %v2006, 0.001
        %v2023 = vadd.f32 %v2007, 0.001
        %v2024 = vadd.f32 %v2008, 0.001
        %v2025 = vadd.f32 %v2009, 0.001
        %v2026 = vadd.f32 %v2010, 0.001
        %v2027 = vadd.f32 %v2011, 0.001
        %v2028 = vadd.f32 %v2012, 0.001
        %v2029 = vsel %vm860, %v1918, 0.0
        %v2030 = vsel %vm860, %v1920, 0.0
        %v2031 = vsel %vm860, %v1922, 0.0
        %v2032 = vsel %vm860, %v1924, 0.0
        %v2033 = vsel %vm860, %v1926, 0.0
        %v2034 = vsel %vm860, %v1928, 0.0
        %v2035 = vsel %vm860, %v1930, 0.0
        %v2036 = vsel %vm860, %v1932, 0.0
        %v2037 = vsel %vm860, %v1934, 0.0
        %v2038 = vsel %vm860, %v1936, 0.0
        %v2039 = vsel %vm860, %v1938, 0.0
        %v2040 = vsel %vm860, %v1940, 0.0
        %v2041 = vsel %vm860, %v1942, 0.0
        %v2042 = vsel %vm860, %v1944, 0.0
        %v2043 = vsel %vm860, %v1946, 0.0
        %v2044 = vsel %vm860, %v1948, 0.0
        %v2045 = vsel %vm859, %v2013, %v2029
        %v2046 = vsel %vm859, %v2014, %v2030
        %v2047 = vsel %vm859, %v2015, %v2031
        %v2048 = vsel %vm859, %v2016, %v2032
        %v2049 = vsel %vm859, %v2017, %v2033
        %v2050 = vsel %vm859, %v2018, %v2034
        %v2051 = vsel %vm859, %v2019, %v2035
        %v2052 = vsel %vm859, %v2020, %v2036
        %v2053 = vsel %vm859, %v2021, %v2037
        %v2054 = vsel %vm859, %v2022, %v2038
        %v2055 = vsel %vm859, %v2023, %v2039
        %v2056 = vsel %vm859, %v2024, %v2040
        %v2057 = vsel %vm859, %v2025, %v2041
        %v2058 = vsel %vm859, %v2026, %v2042
        %v2059 = vsel %vm859, %v2027, %v2043
        %v2060 = vsel %vm859, %v2028, %v2044
        %v2061 = vsel %vm858, %v1981, %v2045
        %v2062 = vsel %vm858, %v1982, %v2046
        %v2063 = vsel %vm858, %v1983, %v2047
        %v2064 = vsel %vm858, %v1984, %v2048
        %v2065 = vsel %vm858, %v1985, %v2049
        %v2066 = vsel %vm858, %v1986, %v2050
        %v2067 = vsel %vm858, %v1987, %v2051
        %v2068 = vsel %vm858, %v1988, %v2052
        %v2069 = vsel %vm858, %v1989, %v2053
        %v2070 = vsel %vm858, %v1990, %v2054
        %v2071 = vsel %vm858, %v1991, %v2055
        %v2072 = vsel %vm858, %v1992, %v2056
        %v2073 = vsel %vm858, %v1993, %v2057
        %v2074 = vsel %vm858, %v1994, %v2058
        %v2075 = vsel %vm858, %v1995, %v2059
        %v2076 = vsel %vm858, %v1996, %v2060
        %v2077 = vsel %vm855, %v1822, %v2061
        %v2078 = vsel %vm855, %v1824, %v2062
        %v2079 = vsel %vm855, %v1826, %v2063
        %v2080 = vsel %vm855, %v1828, %v2064
        %v2081 = vsel %vm855, %v1830, %v2065
        %v2082 = vsel %vm855, %v1832, %v2066
        %v2083 = vsel %vm855, %v1834, %v2067
        %v2084 = vsel %vm855, %v1836, %v2068
        %v2085 = vsel %vm855, %v1838, %v2069
        %v2086 = vsel %vm855, %v1840, %v2070
        %v2087 = vsel %vm855, %v1842, %v2071
        %v2088 = vsel %vm855, %v1844, %v2072
        %v2089 = vsel %vm855, %v1846, %v2073
        %v2090 = vsel %vm855, %v1848, %v2074
        %v2091 = vsel %vm855, %v1850, %v2075
        %v2092 = vsel %vm855, %v1852, %v2076
        %v2093 = vsel %vm852, %v1949, %v2077
        %v2094 = vsel %vm852, %v1950, %v2078
        %v2095 = vsel %vm852, %v1951, %v2079
        %v2096 = vsel %vm852, %v1952, %v2080
        %v2097 = vsel %vm852, %v1953, %v2081
        %v2098 = vsel %vm852, %v1954, %v2082
        %v2099 = vsel %vm852, %v1955, %v2083
        %v2100 = vsel %vm852, %v1956, %v2084
        %v2101 = vsel %vm852, %v1957, %v2085
        %v2102 = vsel %vm852, %v1958, %v2086
        %v2103 = vsel %vm852, %v1959, %v2087
        %v2104 = vsel %vm852, %v1960, %v2088
        %v2105 = vsel %vm852, %v1961, %v2089
        %v2106 = vsel %vm852, %v1962, %v2090
        %v2107 = vsel %vm852, %v1963, %v2091
        %v2108 = vsel %vm852, %v1964, %v2092
        %v2109 = vsel %vm849, %v1613, %v2093
        %v2110 = vsel %vm849, %v1614, %v2094
        %v2111 = vsel %vm849, %v1615, %v2095
        %v2112 = vsel %vm849, %v1616, %v2096
        %v2113 = vsel %vm849, %v1617, %v2097
        %v2114 = vsel %vm849, %v1618, %v2098
        %v2115 = vsel %vm849, %v1619, %v2099
        %v2116 = vsel %vm849, %v1620, %v2100
        %v2117 = vsel %vm849, %v1621, %v2101
        %v2118 = vsel %vm849, %v1622, %v2102
        %v2119 = vsel %vm849, %v1623, %v2103
        %v2120 = vsel %vm849, %v1624, %v2104
        %v2121 = vsel %vm849, %v1625, %v2105
        %v2122 = vsel %vm849, %v1626, %v2106
        %v2123 = vsel %vm849, %v1627, %v2107
        %v2124 = vsel %vm849, %v1628, %v2108
        %v2125 = vsel %vm846, %v1245, %v2109
        %v2126 = vsel %vm846, %v1246, %v2110
        %v2127 = vsel %vm846, %v1247, %v2111
        %v2128 = vsel %vm846, %v1248, %v2112
        %v2129 = vsel %vm846, %v1249, %v2113
        %v2130 = vsel %vm846, %v1250, %v2114
        %v2131 = vsel %vm846, %v1251, %v2115
        %v2132 = vsel %vm846, %v1252, %v2116
        %v2133 = vsel %vm846, %v1253, %v2117
        %v2134 = vsel %vm846, %v1254, %v2118
        %v2135 = vsel %vm846, %v1255, %v2119
        %v2136 = vsel %vm846, %v1256, %v2120
        %v2137 = vsel %vm846, %v1257, %v2121
        %v2138 = vsel %vm846, %v1258, %v2122
        %v2139 = vsel %vm846, %v1259, %v2123
        %v2140 = vsel %vm846, %v1260, %v2124
        %2141 = vst [vmem:[%s290] sm:$0xff] %v2125
        %2142 = vst [vmem:[%s290 + $0x8] sm:$0xff] %v2126
        %2143 = vst [vmem:[%s290 + $0x10] sm:$0xff] %v2127
        %2144 = vst [vmem:[%s290 + $0x18] sm:$0xff] %v2128
        %2145 = vst [vmem:[%s290 + $0x20] sm:$0xff] %v2129
        %2146 = vst [vmem:[%s290 + $0x28] sm:$0xff] %v2130
        %2147 = vst [vmem:[%s290 + $0x30] sm:$0xff] %v2131
        %2148 = vst [vmem:[%s290 + $0x38] sm:$0xff] %v2132
        %2149 = vst [vmem:[%s290 + $0x40] sm:$0xff] %v2133
        %2150 = vst [vmem:[%s290 + $0x48] sm:$0xff] %v2134
        %2151 = vst [vmem:[%s290 + $0x50] sm:$0xff] %v2135
        %2152 = vst [vmem:[%s290 + $0x58] sm:$0xff] %v2136
        %2153 = vst [vmem:[%s290 + $0x60] sm:$0xff] %v2137
        %2154 = vst [vmem:[%s290 + $0x68] sm:$0xff] %v2138
        %2155 = vst [vmem:[%s290 + $0x70] sm:$0xff] %v2139
        %2156 = vst [vmem:[%s290 + $0x78] sm:$0xff] %v2140
        %s2157 = smul.u32 16, %s18
        %p2158 = scmp.lt.s32.totalorder %s2157, 31
        %s2159 = scalar_select %p2158, %s2157, 31
        %s2160 = smul.addr %s2159, 8
        %s2161 = scalar_lea.vmem %s6, %s2160
        // Predicated region
        $region49: #{primitive_regressor.1} parent=43 // pred_check
          %p2162 = pneg %p172
        $region50: #{primitive_regressor.1} parent=43 // pred_check_branch
          %2164 = sbr.rel (%p2162) target = $region52
        $region51: #{primitive_regressor.1} parent=43 // pred_region
          %s2165 = smul.u32 16, %s18
        $region52: #{primitive_regressor.1} parent=43 // pred_fallthru
          _
      $region44: #{primitive_regressor.1} parent=5 // pred_fallthru
        _
      %p2166 = scmp.le.s32.totalorder 2, %s13
      // Predicated region
      $region53: #{primitive_regressor.1} parent=5 // pred_check
        %p2167 = pneg %p2166
      $region54: #{primitive_regressor.1} parent=5 // pred_check_branch
        %2169 = sbr.rel (%p2167) target = $region56
      $region55: #{primitive_regressor.1} parent=5 // pred_region
        %s2170 = ssub.s32 %s13, 2
        // Predicated region
        $region57: #{primitive_regressor.1} parent=55 // pred_check
          %p2171 = pneg %p178
        $region58: #{primitive_regressor.1} parent=55 // pred_check_branch
          %2173 = sbr.rel (%p2171) target = $region60
        $region59: #{primitive_regressor.1} parent=55 // pred_region
          %s2174 = smul.u32 16, %s19
          %p2175 = scmp.lt.s32.totalorder %s2174, 31
          %s2176 = scalar_select %p2175, %s2174, 31
          %s2177 = smul.addr %s2176, 8
          %s2178 = scalar_lea.vmem %s6, %s2177
        $region60: #{primitive_regressor.1} parent=55 // pred_fallthru
          _
      $region56: #{primitive_regressor.1} parent=5 // pred_fallthru
        _
    $region6: #{primitive_regressor.1} parent=1 // loop_footer
      %s17 = sadd.s32 1, %s13
    $region7: #{primitive_regressor.1} parent=1 // loop_footer_branch
      %12 = sbr.rel target = $region3
    $region8: #{primitive_regressor.1} parent=1 // loop_exit
      _
    %2179 = vsyncpa [#allocation3], 1
    %s2180 = scalar_lea.sflag [#allocation3], 1
    %2181 = vsyncpa %s2180, 1

</llo_original>
